<compile_context>
chip_gen: v6e
topology: v6e:2x2x1
jax: 0.10.0
libtpu: 0.0.40
codegen_flags: <defaults>
</compile_context>

<pallas_src>
import functools

import jax
import jax.numpy as jnp
from jax.experimental import pallas as pl
from jax.experimental.pallas import tpu as pltpu

F32 = jnp.float32
BF16 = jnp.bfloat16


# ------------------------------ fused kernel -------------------------------

def mpnn_kernel(
    # inputs
    node_attr_ref,      # (N, node_in) f32        constant block
    eattr_ref,          # (TE, (Ein+1)*H) bf16    pre-expanded edge feats tile
    ssrc_ref,           # (TE, N) bf16            edge->src one-hot gather tile
    sdst_ref,           # (N, TE) bf16            edge->dst one-hot scatter tile
    memb_ref,           # (G, N) f32              node->graph membership
    proj_w_ref, proj_b_ref,          # (node_in, H), (1, H)
    wcat_ref,           # ((Ein+1)*H, H) bf16     fused edge-network weight
    conv_b_ref,         # (1, H)                  NNConv bias
    gru_w_ref, gru_b_ref,            # (2H, 6H) block-diag, (1, 6H)
    lstm_w_ref, lstm_b_ref,          # (6H, 8H), (1, 8H)
    spars_w_ref, spars_b_ref, prelu_a_ref,   # (4H, R), (1, R), (1, 1)
    # output
    out_ref,            # (G, R)
    # scratch (VMEM, persistent across the grid)
    h0_s, h_s, hb_s, msg_s,   # (N,H) f32, (N,H) f32, (N,H) bf16, (N,H) f32
    *, H, EIN, G, n_s2s_steps,
):
    step = pl.program_id(0)
    et = pl.program_id(1)
    n_steps = pl.num_programs(0)
    n_et = pl.num_programs(1)

    # --- init: project node features (Linear + ReLU) once ---
    @pl.when(jnp.logical_and(step == 0, et == 0))
    def _init():
        h0 = jnp.dot(node_attr_ref[...], proj_w_ref[...],
                     preferred_element_type=F32) + proj_b_ref[...]
        h0 = jnp.maximum(h0, 0.0)
        h0_s[...] = h0
        h_s[...] = h0
        hb_s[...] = h0.astype(BF16)

    # --- reset message accumulator at the start of every MP step ---
    @pl.when(et == 0)
    def _zero_msg():
        msg_s[...] = jnp.zeros_like(msg_s)

    # --- NNConv message for this edge tile (fused bilinear form on the MXU) ---
    # gather source-node features: bf16 x bf16 MXU matmul, f32 accumulate
    h_src = jnp.dot(ssrc_ref[...], hb_s[...],
                    preferred_element_type=F32)                         # (TE, H) f32
    h_src_b = h_src.astype(BF16)
    # hx[:, k*H + i] = h_src[:, i] * e[:, k]  -> single wide bf16 matmul with wcat
    hx = jnp.concatenate([h_src_b] * (EIN + 1), axis=1) * eattr_ref[...]  # (TE,(Ein+1)*H)
    msg = jnp.dot(hx, wcat_ref[...], preferred_element_type=F32)        # (TE, H) f32
    # scatter-sum messages into destination nodes (bf16 x bf16, f32 accumulate)
    msg_s[...] += jnp.dot(sdst_ref[...], msg.astype(BF16),
                          preferred_element_type=F32)

    # --- end of edge pass: NNConv bias + ReLU, then fused GRU cell ---
    @pl.when(et == n_et - 1)
    def _gru():
        m = jnp.maximum(msg_s[...] + conv_b_ref[...], 0.0)              # (N, H)
        hprev = h_s[...]
        # block-diagonal fused weight: one MXU issue, exact PyTorch GRU math
        mh = jnp.concatenate([m, hprev], axis=1)                        # (N, 2H)
        gates = jnp.dot(mh, gru_w_ref[...],
                        preferred_element_type=F32) + gru_b_ref[...]    # (N, 6H)
        gi = gates[:, :3 * H]
        gh = gates[:, 3 * H:]
        r = jax.nn.sigmoid(gi[:, :H] + gh[:, :H])
        z = jax.nn.sigmoid(gi[:, H:2 * H] + gh[:, H:2 * H])
        n = jnp.tanh(gi[:, 2 * H:] + r * gh[:, 2 * H:])
        hnew = (1.0 - z) * n + z * hprev
        h_s[...] = hnew
        hb_s[...] = hnew.astype(BF16)

    # --- final grid point: Set2Set readout + sparsify (Linear + PReLU) head ---
    @pl.when(jnp.logical_and(step == n_steps - 1, et == n_et - 1))
    def _readout():
        D = 2 * H
        feat = jnp.concatenate([h0_s[...], h_s[...]], axis=1)           # (N, D)
        memb = memb_ref[...]                                            # (G, N)
        mask = memb > 0.5
        lh = jnp.zeros((G, D), F32)
        lc = jnp.zeros((G, D), F32)
        q_star = jnp.zeros((G, 2 * D), F32)
        for _ in range(n_s2s_steps):
            # LSTM cell: single fused matmul [q_star | lh] @ [Wih; Whh]
            x_cat = jnp.concatenate([q_star, lh], axis=1)               # (G, 6H)
            gates = jnp.dot(x_cat, lstm_w_ref[...],
                            preferred_element_type=F32) + lstm_b_ref[...]   # (G, 4D)
            ig = jax.nn.sigmoid(gates[:, :D])
            fg = jax.nn.sigmoid(gates[:, D:2 * D])
            gg = jnp.tanh(gates[:, 2 * D:3 * D])
            og = jax.nn.sigmoid(gates[:, 3 * D:])
            lc = fg * lc + ig * gg
            lh = og * jnp.tanh(lc)
            q = lh                                                      # (G, D)
            # per-graph masked softmax attention, scores in (G, N) layout
            scores = jax.lax.dot_general(q, feat, (((1,), (1,)), ((), ())),
                                         preferred_element_type=F32)   # (G, N)
            scores = jnp.where(mask, scores, -1e30)
            mmax = jnp.max(scores, axis=-1, keepdims=True)              # (G, 1)
            p = jnp.where(mask, jnp.exp(scores - mmax), 0.0)
            denom = jnp.sum(p, axis=-1, keepdims=True)                  # (G, 1)
            alpha = p / jnp.maximum(denom, 1e-20)   # exact normalization
            readout = jnp.dot(alpha, feat, preferred_element_type=F32)  # (G, D)
            q_star = jnp.concatenate([q, readout], axis=1)              # (G, 2D)
        y = jnp.dot(q_star, spars_w_ref[...],
                    preferred_element_type=F32) + spars_b_ref[...]      # (G, R)
        a = prelu_a_ref[...]                                            # (1, 1)
        out_ref[...] = jnp.where(y >= 0.0, y, a * y)


# ------------------------------- MPNN forward ------------------------------

@functools.partial(jax.jit,
                   static_argnames=("num_step_message_passing", "num_step_set2set"))
def mpnn_forward(params, node_attr, edge_attr, ssrc, sdst, memb_gn,
                 num_step_message_passing=3, num_step_set2set=3):
    N, node_in = node_attr.shape
    E, Ein = edge_attr.shape
    G = memb_gn.shape[0]
    H = params["proj_w"].shape[1]
    R = params["sparsify_w"].shape[1]

    # --- edge-tile size: make the whole edge set VMEM-resident when it fits
    # (constant block index -> fetched once for all MP steps), else stream
    # 512-row tiles.  bf16 bytes per edge: ssrc row + sdst col + expanded feats.
    bytes_per_edge = 2 * N + 2 * N + 2 * (Ein + 1) * H
    resident_budget = 24 * 1024 * 1024
    if E * bytes_per_edge <= resident_budget:
        TE = E
    else:
        TE = 512
        # NOTE: padded edges must have all-zero one-hot rows in ssrc and
        # all-zero columns in sdst (e.g. out-of-range indices through one_hot);
        # zero gather rows make the folded bias "1" feature contribute nothing.
        assert E % TE == 0, "pad E to a multiple of 512 for tiling"
    n_et = E // TE

    # --- fold the edge-network Linear bias in as an extra constant "1" edge
    # feature and reshape its weight so that the per-edge message is one MXU
    # matmul.  Matches DGL NNConv's edge_func(e).view(E, in_feats, out_feats):
    #   msg[e, j] = sum_{k,i} eattr_aug[e,k] * h_src[e,i] * w_aug[k, i*H + j]
    eattr_aug = jnp.concatenate([edge_attr, jnp.ones((E, 1), F32)], axis=1)   # (E, Ein+1)
    # pre-expand to lane-dense (E, (Ein+1)*H): eattr_exp[:, k*H+i] = e[:, k]
    eattr_exp = jnp.repeat(eattr_aug, H, axis=1).astype(BF16)                 # (E, (Ein+1)*H)
    w_aug = jnp.concatenate([params["edge_w"], params["edge_b"]], axis=0)     # (Ein+1, H*H)
    wcat = w_aug.reshape((Ein + 1) * H, H).astype(BF16)                       # ((Ein+1)*H, H)

    # --- fused GRU weight: block-diagonal so the n-gate `r * (h @ Whh_n + b)`
    # semantics are preserved exactly while issuing a single MXU matmul.
    zH = jnp.zeros((H, 3 * H), F32)
    gru_w = jnp.concatenate(
        [jnp.concatenate([params["gru_wih"], zH], axis=1),
         jnp.concatenate([zH, params["gru_whh"]], axis=1)], axis=0)           # (2H, 6H)
    gru_b = jnp.concatenate([params["gru_bih"], params["gru_bhh"]], axis=1)   # (1, 6H)

    # --- fused Set2Set LSTM weight (exact: gates are purely additive in x, h)
    lstm_w = jnp.concatenate([params["lstm_wih"], params["lstm_whh"]], axis=0)  # (6H, 8H)
    lstm_b = params["lstm_bih"] + params["lstm_bhh"]                            # (1, 8H)

    # one-hot gather/scatter matrices: exact in bf16, half the HBM bytes,
    # fed to the MXU in bf16 (no f32 upcast in-kernel).
    ssrc_bf = ssrc.astype(BF16)
    sdst_bf = sdst.astype(BF16)

    kernel = functools.partial(mpnn_kernel, H=H, EIN=Ein, G=G,
                               n_s2s_steps=num_step_set2set)
    const = lambda s, e: (0, 0)

    grid_spec = pltpu.PrefetchScalarGridSpec(
        num_scalar_prefetch=0,
        grid=(num_step_message_passing, n_et),
        in_specs=[
            pl.BlockSpec((N, node_in), const),                          # node_attr
            pl.BlockSpec((TE, (Ein + 1) * H), lambda s, e: (e, 0)),     # expanded edge feats
            pl.BlockSpec((TE, N), lambda s, e: (e, 0)),                 # ssrc tile (bf16)
            pl.BlockSpec((N, TE), lambda s, e: (0, e)),                 # sdst tile (bf16)
            pl.BlockSpec((G, N), const),                                # membership
            pl.BlockSpec((node_in, H), const),                          # proj_w
            pl.BlockSpec((1, H), const),                                # proj_b
            pl.BlockSpec(((Ein + 1) * H, H), const),                    # wcat (bf16)
            pl.BlockSpec((1, H), const),                                # conv_b
            pl.BlockSpec((2 * H, 6 * H), const),                        # gru_w (block diag)
            pl.BlockSpec((1, 6 * H), const),                            # gru_b
            pl.BlockSpec((6 * H, 8 * H), const),                        # lstm_w (fused)
            pl.BlockSpec((1, 8 * H), const),                            # lstm_b
            pl.BlockSpec((4 * H, R), const),                            # sparsify_w
            pl.BlockSpec((1, R), const),                                # sparsify_b
            pl.BlockSpec((1, 1), const),                                # prelu alpha
        ],
        out_specs=pl.BlockSpec((G, R), const),
        scratch_shapes=[
            pltpu.VMEM((N, H), F32),    # h0  (projected node feats)
            pltpu.VMEM((N, H), F32),    # h   (current node feats / GRU hidden)
            pltpu.VMEM((N, H), BF16),   # bf16 shadow of h for the MXU gather
            pltpu.VMEM((N, H), F32),    # message accumulator
        ],
    )

    # explicit VMEM budget (double-buffered streamed tiles + constants + scratch),
    # clamped to 64 MiB so it is valid on v7x (64 MiB physical) as well as v5e/v6e.
    est_bytes = (
        2 * (2 * TE * N * 2 + TE * (Ein + 1) * H * 2)                 # edge tiles x2 bufs
        + (N * node_in + G * N) * 4                                   # node feats + membership
        + (Ein + 1) * H * H * 2                                       # wcat bf16
        + (node_in * H + 6 * H + 2 * H * 6 * H + 6 * H * 8 * H
           + 8 * H + 4 * H * R + R + 2) * 4                           # f32 weights/biases
        + 4 * N * H * 4                                               # scratch
    )
    vmem_limit = int(min(max(2 * est_bytes, 32 * 1024 * 1024), 64 * 1024 * 1024))

    return pl.pallas_call(
        kernel,
        out_shape=jax.ShapeDtypeStruct((G, R), F32),
        grid_spec=grid_spec,
        compiler_params=pltpu.CompilerParams(
            dimension_semantics=("arbitrary", "arbitrary"),
            vmem_limit_bytes=vmem_limit),
    )(node_attr, eattr_exp, ssrc_bf, sdst_bf, memb_gn,
      params["proj_w"], params["proj_b"], wcat, params["conv_b"],
      gru_w, gru_b, lstm_w, lstm_b,
      params["sparsify_w"], params["sparsify_b"], params["prelu_a"])


# ----------------------------------- main -----------------------------------

if __name__ == "__main__":
    key = jax.random.PRNGKey(0)
    N, E, G = 16, 32, 2            # 2 graphs of 8 nodes, 16 edges each
    node_in, edge_in = 8, 4
    H = 32                         # hidden_feats
    readout_feats = 128            # lane-dense head width

    ks = jax.random.split(key, 24)

    def init(k, shape, scale=0.1):
        return (scale * jax.random.normal(k, shape)).astype(F32)

    params = {
        # project_node_feats: Linear(node_in, H) + ReLU
        "proj_w": init(ks[0], (node_in, H)),
        "proj_b": init(ks[1], (1, H)),
        # edge network: Linear(edge_in, H*H)
        "edge_w": init(ks[2], (edge_in, H * H)),
        "edge_b": init(ks[3], (1, H * H)),
        # NNConv bias
        "conv_b": init(ks[4], (1, H)),
        # GRU(H, H), gate order [r, z, n] (PyTorch layout, stored transposed)
        "gru_wih": init(ks[5], (H, 3 * H)),
        "gru_whh": init(ks[6], (H, 3 * H)),
        "gru_bih": init(ks[7], (1, 3 * H)),
        "gru_bhh": init(ks[8], (1, 3 * H)),
        # Set2Set LSTM(input=4H, hidden=2H), gate order [i, f, g, o]
        "lstm_wih": init(ks[9], (4 * H, 8 * H)),
        "lstm_whh": init(ks[10], (2 * H, 8 * H)),
        "lstm_bih": init(ks[11], (1, 8 * H)),
        "lstm_bhh": init(ks[12], (1, 8 * H)),
        # sparsify: Linear(4H, readout_feats) + PReLU(num_parameters=1)
        "sparsify_w": init(ks[13], (4 * H, readout_feats)),
        "sparsify_b": init(ks[14], (1, readout_feats)),
        "prelu_a": jnp.full((1, 1), 0.25, F32),
    }

    # graph data
    node_attr = init(ks[15], (N, node_in), 1.0)
    edge_attr = init(ks[16], (E, edge_in), 1.0)
    src0 = jax.random.randint(ks[17], (E // 2,), 0, N // 2)
    dst0 = jax.random.randint(ks[18], (E // 2,), 0, N // 2)
    src1 = jax.random.randint(ks[19], (E // 2,), N // 2, N)
    dst1 = jax.random.randint(ks[20], (E // 2,), N // 2, N)
    src = jnp.concatenate([src0, src1])
    dst = jnp.concatenate([dst0, dst1])
    ssrc = jax.nn.one_hot(src, N, dtype=F32)            # (E, N) edge->src gather
    sdst = jax.nn.one_hot(dst, N, dtype=F32).T          # (N, E) edge->dst scatter-sum
    graph_id = jnp.concatenate([jnp.zeros((N // 2,), jnp.int32),
                                jnp.ones((N // 2,), jnp.int32)])
    memb_gn = jax.nn.one_hot(graph_id, G, dtype=F32).T  # (G, N) graph membership

    out = mpnn_forward(params, node_attr, edge_attr, ssrc, sdst, memb_gn,
                       num_step_message_passing=3, num_step_set2set=3)
    out = jax.block_until_ready(out)
    assert out.shape == (G, readout_feats) and out.dtype == F32
    print("KERNEL_OK")
</pallas_src>

<mosaic_0001>
module attributes {stable_mosaic.version = 11 : i64} {
  func.func @mpnn_kernel(%arg0: i32, %arg1: i32, %arg2: memref<16x8xf32, #tpu.memory_space<vmem>>, %arg3: memref<32x160xbf16, #tpu.memory_space<vmem>>, %arg4: memref<32x16xbf16, #tpu.memory_space<vmem>>, %arg5: memref<16x32xbf16, #tpu.memory_space<vmem>>, %arg6: memref<2x16xf32, #tpu.memory_space<vmem>>, %arg7: memref<8x32xf32, #tpu.memory_space<vmem>>, %arg8: memref<1x32xf32, #tpu.memory_space<vmem>>, %arg9: memref<160x32xbf16, #tpu.memory_space<vmem>>, %arg10: memref<1x32xf32, #tpu.memory_space<vmem>>, %arg11: memref<64x192xf32, #tpu.memory_space<vmem>>, %arg12: memref<1x192xf32, #tpu.memory_space<vmem>>, %arg13: memref<192x256xf32, #tpu.memory_space<vmem>>, %arg14: memref<1x256xf32, #tpu.memory_space<vmem>>, %arg15: memref<128x128xf32, #tpu.memory_space<vmem>>, %arg16: memref<1x128xf32, #tpu.memory_space<vmem>>, %arg17: memref<1x1xf32, #tpu.memory_space<vmem>>, %arg18: memref<2x128xf32, #tpu.memory_space<vmem>>, %arg19: memref<16x32xf32, #tpu.memory_space<vmem>>, %arg20: memref<16x32xf32, #tpu.memory_space<vmem>>, %arg21: memref<16x32xbf16, #tpu.memory_space<vmem>>, %arg22: memref<16x32xf32, #tpu.memory_space<vmem>>) attributes {dimension_semantics = [#tpu.dimension_semantics<arbitrary>, #tpu.dimension_semantics<arbitrary>], iteration_bounds = array<i64: 3, 1>, scalar_prefetch = 0 : i64, scratch_operands = 4 : i64, tpu.core_type = #tpu.core_type<tc>, window_params = [{pipeline_mode = #tpu.pipeline_mode<synchronous>, transform_indices = @transform_0, window_bounds = array<i64: 16, 8>}, {transform_indices = @transform_1, window_bounds = array<i64: 32, 160>}, {transform_indices = @transform_2, window_bounds = array<i64: 32, 16>}, {transform_indices = @transform_3, window_bounds = array<i64: 16, 32>}, {pipeline_mode = #tpu.pipeline_mode<synchronous>, transform_indices = @transform_4, window_bounds = array<i64: 2, 16>}, {pipeline_mode = #tpu.pipeline_mode<synchronous>, transform_indices = @transform_5, window_bounds = array<i64: 8, 32>}, {pipeline_mode = #tpu.pipeline_mode<synchronous>, transform_indices = @transform_6, window_bounds = array<i64: 1, 32>}, {pipeline_mode = #tpu.pipeline_mode<synchronous>, transform_indices = @transform_7, window_bounds = array<i64: 160, 32>}, {pipeline_mode = #tpu.pipeline_mode<synchronous>, transform_indices = @transform_8, window_bounds = array<i64: 1, 32>}, {pipeline_mode = #tpu.pipeline_mode<synchronous>, transform_indices = @transform_9, window_bounds = array<i64: 64, 192>}, {pipeline_mode = #tpu.pipeline_mode<synchronous>, transform_indices = @transform_10, window_bounds = array<i64: 1, 192>}, {pipeline_mode = #tpu.pipeline_mode<synchronous>, transform_indices = @transform_11, window_bounds = array<i64: 192, 256>}, {pipeline_mode = #tpu.pipeline_mode<synchronous>, transform_indices = @transform_12, window_bounds = array<i64: 1, 256>}, {pipeline_mode = #tpu.pipeline_mode<synchronous>, transform_indices = @transform_13, window_bounds = array<i64: 128, 128>}, {pipeline_mode = #tpu.pipeline_mode<synchronous>, transform_indices = @transform_14, window_bounds = array<i64: 1, 128>}, {pipeline_mode = #tpu.pipeline_mode<synchronous>, transform_indices = @transform_15, window_bounds = array<i64: 1, 1>}, {pipeline_mode = #tpu.pipeline_mode<synchronous>, transform_indices = @transform_16, window_bounds = array<i64: 2, 128>}]} {
    %c0_i32 = arith.constant 0 : i32
    %0 = arith.cmpi eq, %arg0, %c0_i32 : i32
    %c0_i32_0 = arith.constant 0 : i32
    %1 = arith.cmpi eq, %arg1, %c0_i32_0 : i32
    %2 = arith.andi %0, %1 : i1
    %3 = arith.extui %2 : i1 to i32
    %c0_i32_1 = arith.constant 0 : i32
    %4 = arith.cmpi ne, %3, %c0_i32_1 : i32
    scf.if %4 {
      %c0_23 = arith.constant 0 : index
      %c0_24 = arith.constant 0 : index
      %31 = vector.load %arg2[%c0_23, %c0_24] : memref<16x8xf32, #tpu.memory_space<vmem>>, vector<16x8xf32>
      %c0_25 = arith.constant 0 : index
      %c0_26 = arith.constant 0 : index
      %32 = vector.load %arg7[%c0_25, %c0_26] : memref<8x32xf32, #tpu.memory_space<vmem>>, vector<8x32xf32>
      %cst_27 = arith.constant dense<0.000000e+00> : vector<16x32xf32>
      %33 = tpu.matmul %31, %32, %cst_27 {dimension_numbers = #tpu.dot_dimension_numbers<[1], [0], [0], [1], [0, 0, 1, 1], [], []>} : vector<16x8xf32>, vector<8x32xf32>, vector<16x32xf32> -> vector<16x32xf32>
      %c0_28 = arith.constant 0 : index
      %c0_29 = arith.constant 0 : index
      %34 = vector.load %arg8[%c0_28, %c0_29] : memref<1x32xf32, #tpu.memory_space<vmem>>, vector<1x32xf32>
      %35 = vector.broadcast %34 : vector<1x32xf32> to vector<16x32xf32>
      %36 = arith.addf %33, %35 : vector<16x32xf32>
      %cst_30 = arith.constant 0.000000e+00 : f32
      %37 = vector.broadcast %cst_30 : f32 to vector<16x32xf32>
      %38 = arith.maximumf %36, %37 : vector<16x32xf32>
      %c0_31 = arith.constant 0 : index
      %c0_32 = arith.constant 0 : index
      %39 = vector.load %arg19[%c0_31, %c0_32] : memref<16x32xf32, #tpu.memory_space<vmem>>, vector<16x32xf32>
      tpu.vector_store %arg19[%c0_31, %c0_32], %38 {strides = array<i32>} : memref<16x32xf32, #tpu.memory_space<vmem>>, vector<16x32xf32>,
      %c0_33 = arith.constant 0 : index
      %c0_34 = arith.constant 0 : index
      %40 = vector.load %arg20[%c0_33, %c0_34] : memref<16x32xf32, #tpu.memory_space<vmem>>, vector<16x32xf32>
      tpu.vector_store %arg20[%c0_33, %c0_34], %38 {strides = array<i32>} : memref<16x32xf32, #tpu.memory_space<vmem>>, vector<16x32xf32>,
      %41 = arith.truncf %38 : vector<16x32xf32> to vector<16x32xbf16>
      %c0_35 = arith.constant 0 : index
      %c0_36 = arith.constant 0 : index
      %42 = vector.load %arg21[%c0_35, %c0_36] : memref<16x32xbf16, #tpu.memory_space<vmem>>, vector<16x32xbf16>
      tpu.vector_store %arg21[%c0_35, %c0_36], %41 {strides = array<i32>} : memref<16x32xbf16, #tpu.memory_space<vmem>>, vector<16x32xbf16>,
    } else {
    }
    %c0_i32_2 = arith.constant 0 : i32
    %5 = arith.cmpi eq, %arg1, %c0_i32_2 : i32
    %6 = arith.extui %5 : i1 to i32
    %c0_i32_3 = arith.constant 0 : i32
    %7 = arith.cmpi ne, %6, %c0_i32_3 : i32
    scf.if %7 {
      %cst_23 = arith.constant 0.000000e+00 : f32
      %31 = vector.broadcast %cst_23 : f32 to vector<16x32xf32>
      %c0_24 = arith.constant 0 : index
      %c0_25 = arith.constant 0 : index
      %32 = vector.load %arg22[%c0_24, %c0_25] : memref<16x32xf32, #tpu.memory_space<vmem>>, vector<16x32xf32>
      tpu.vector_store %arg22[%c0_24, %c0_25], %31 {strides = array<i32>} : memref<16x32xf32, #tpu.memory_space<vmem>>, vector<16x32xf32>,
    } else {
    }
    %c0 = arith.constant 0 : index
    %c0_4 = arith.constant 0 : index
    %8 = vector.load %arg4[%c0, %c0_4] : memref<32x16xbf16, #tpu.memory_space<vmem>>, vector<32x16xbf16>
    %c0_5 = arith.constant 0 : index
    %c0_6 = arith.constant 0 : index
    %9 = vector.load %arg21[%c0_5, %c0_6] : memref<16x32xbf16, #tpu.memory_space<vmem>>, vector<16x32xbf16>
    %cst = arith.constant dense<0.000000e+00> : vector<32x32xf32>
    %10 = tpu.matmul %8, %9, %cst {dimension_numbers = #tpu.dot_dimension_numbers<[1], [0], [0], [1], [0, 0, 1, 1], [], []>} : vector<32x16xbf16>, vector<16x32xbf16>, vector<32x32xf32> -> vector<32x32xf32>
    %11 = arith.truncf %10 : vector<32x32xf32> to vector<32x32xbf16>
    %12 = tpu.concatenate %11, %11, %11, %11, %11 in 1 : vector<32x32xbf16>, vector<32x32xbf16>, vector<32x32xbf16>, vector<32x32xbf16>, vector<32x32xbf16> -> vector<32x160xbf16>
    %c0_7 = arith.constant 0 : index
    %c0_8 = arith.constant 0 : index
    %13 = vector.load %arg3[%c0_7, %c0_8] : memref<32x160xbf16, #tpu.memory_space<vmem>>, vector<32x160xbf16>
    %14 = arith.mulf %12, %13 : vector<32x160xbf16>
    %c0_9 = arith.constant 0 : index
    %c0_10 = arith.constant 0 : index
    %15 = vector.load %arg9[%c0_9, %c0_10] : memref<160x32xbf16, #tpu.memory_space<vmem>>, vector<160x32xbf16>
    %cst_11 = arith.constant dense<0.000000e+00> : vector<32x32xf32>
    %16 = tpu.matmul %14, %15, %cst_11 {dimension_numbers = #tpu.dot_dimension_numbers<[1], [0], [0], [1], [0, 0, 1, 1], [], []>} : vector<32x160xbf16>, vector<160x32xbf16>, vector<32x32xf32> -> vector<32x32xf32>
    %c0_12 = arith.constant 0 : index
    %c0_13 = arith.constant 0 : index
    %17 = vector.load %arg22[%c0_12, %c0_13] : memref<16x32xf32, #tpu.memory_space<vmem>>, vector<16x32xf32>
    %c0_14 = arith.constant 0 : index
    %c0_15 = arith.constant 0 : index
    %18 = vector.load %arg5[%c0_14, %c0_15] : memref<16x32xbf16, #tpu.memory_space<vmem>>, vector<16x32xbf16>
    %19 = arith.truncf %16 : vector<32x32xf32> to vector<32x32xbf16>
    %cst_16 = arith.constant dense<0.000000e+00> : vector<16x32xf32>
    %20 = tpu.matmul %18, %19, %cst_16 {dimension_numbers = #tpu.dot_dimension_numbers<[1], [0], [0], [1], [0, 0, 1, 1], [], []>} : vector<16x32xbf16>, vector<32x32xbf16>, vector<16x32xf32> -> vector<16x32xf32>
    %21 = arith.addf %17, %20 : vector<16x32xf32>
    %c0_17 = arith.constant 0 : index
    %c0_18 = arith.constant 0 : index
    %22 = vector.load %arg22[%c0_17, %c0_18] : memref<16x32xf32, #tpu.memory_space<vmem>>, vector<16x32xf32>
    tpu.vector_store %arg22[%c0_17, %c0_18], %21 {strides = array<i32>} : memref<16x32xf32, #tpu.memory_space<vmem>>, vector<16x32xf32>,
    %c0_i32_19 = arith.constant 0 : i32
    %23 = arith.cmpi eq, %arg1, %c0_i32_19 : i32
    %24 = arith.extui %23 : i1 to i32
    %c0_i32_20 = arith.constant 0 : i32
    %25 = arith.cmpi ne, %24, %c0_i32_20 : i32
    scf.if %25 {
      %c0_23 = arith.constant 0 : index
      %c0_24 = arith.constant 0 : index
      %31 = vector.load %arg22[%c0_23, %c0_24] : memref<16x32xf32, #tpu.memory_space<vmem>>, vector<16x32xf32>
      %c0_25 = arith.constant 0 : index
      %c0_26 = arith.constant 0 : index
      %32 = vector.load %arg10[%c0_25, %c0_26] : memref<1x32xf32, #tpu.memory_space<vmem>>, vector<1x32xf32>
      %33 = vector.broadcast %32 : vector<1x32xf32> to vector<16x32xf32>
      %34 = arith.addf %31, %33 : vector<16x32xf32>
      %cst_27 = arith.constant 0.000000e+00 : f32
      %35 = vector.broadcast %cst_27 : f32 to vector<16x32xf32>
      %36 = arith.maximumf %34, %35 : vector<16x32xf32>
      %c0_28 = arith.constant 0 : index
      %c0_29 = arith.constant 0 : index
      %37 = vector.load %arg20[%c0_28, %c0_29] : memref<16x32xf32, #tpu.memory_space<vmem>>, vector<16x32xf32>
      %38 = tpu.concatenate %36, %37 in 1 : vector<16x32xf32>, vector<16x32xf32> -> vector<16x64xf32>
      %c0_30 = arith.constant 0 : index
      %c0_31 = arith.constant 0 : index
      %39 = vector.load %arg11[%c0_30, %c0_31] : memref<64x192xf32, #tpu.memory_space<vmem>>, vector<64x192xf32>
      %cst_32 = arith.constant dense<0.000000e+00> : vector<16x192xf32>
      %40 = tpu.matmul %38, %39, %cst_32 {dimension_numbers = #tpu.dot_dimension_numbers<[1], [0], [0], [1], [0, 0, 1, 1], [], []>} : vector<16x64xf32>, vector<64x192xf32>, vector<16x192xf32> -> vector<16x192xf32>
      %c0_33 = arith.constant 0 : index
      %c0_34 = arith.constant 0 : index
      %41 = vector.load %arg12[%c0_33, %c0_34] : memref<1x192xf32, #tpu.memory_space<vmem>>, vector<1x192xf32>
      %42 = vector.broadcast %41 : vector<1x192xf32> to vector<16x192xf32>
      %43 = arith.addf %40, %42 : vector<16x192xf32>
      %44 = vector.extract_strided_slice %43 {offsets = [0, 0], sizes = [16, 96], strides = [1, 1]} : vector<16x192xf32> to vector<16x96xf32>
      %45 = vector.extract_strided_slice %43 {offsets = [0, 96], sizes = [16, 96], strides = [1, 1]} : vector<16x192xf32> to vector<16x96xf32>
      %46 = vector.extract_strided_slice %44 {offsets = [0, 0], sizes = [16, 32], strides = [1, 1]} : vector<16x96xf32> to vector<16x32xf32>
      %47 = vector.extract_strided_slice %45 {offsets = [0, 0], sizes = [16, 32], strides = [1, 1]} : vector<16x96xf32> to vector<16x32xf32>
      %48 = arith.addf %46, %47 : vector<16x32xf32>
      %49 = arith.negf %48 : vector<16x32xf32>
      %50 = math.exp %49 : vector<16x32xf32>
      %cst_35 = arith.constant 1.000000e+00 : f32
      %51 = vector.broadcast %cst_35 : f32 to vector<16x32xf32>
      %52 = arith.addf %51, %50 : vector<16x32xf32>
      %53 = arith.divf %51, %52 : vector<16x32xf32>
      %54 = vector.extract_strided_slice %44 {offsets = [0, 32], sizes = [16, 32], strides = [1, 1]} : vector<16x96xf32> to vector<16x32xf32>
      %55 = vector.extract_strided_slice %45 {offsets = [0, 32], sizes = [16, 32], strides = [1, 1]} : vector<16x96xf32> to vector<16x32xf32>
      %56 = arith.addf %54, %55 : vector<16x32xf32>
      %57 = arith.negf %56 : vector<16x32xf32>
      %58 = math.exp %57 : vector<16x32xf32>
      %cst_36 = arith.constant 1.000000e+00 : f32
      %59 = vector.broadcast %cst_36 : f32 to vector<16x32xf32>
      %60 = arith.addf %59, %58 : vector<16x32xf32>
      %61 = arith.divf %59, %60 : vector<16x32xf32>
      %62 = vector.extract_strided_slice %44 {offsets = [0, 64], sizes = [16, 32], strides = [1, 1]} : vector<16x96xf32> to vector<16x32xf32>
      %63 = vector.extract_strided_slice %45 {offsets = [0, 64], sizes = [16, 32], strides = [1, 1]} : vector<16x96xf32> to vector<16x32xf32>
      %64 = arith.mulf %53, %63 : vector<16x32xf32>
      %65 = arith.addf %62, %64 : vector<16x32xf32>
      %66 = math.tanh %65 : vector<16x32xf32>
      %cst_37 = arith.constant 1.000000e+00 : f32
      %67 = vector.broadcast %cst_37 : f32 to vector<16x32xf32>
      %68 = arith.subf %67, %61 : vector<16x32xf32>
      %69 = arith.mulf %68, %66 : vector<16x32xf32>
      %70 = arith.mulf %61, %37 : vector<16x32xf32>
      %71 = arith.addf %69, %70 : vector<16x32xf32>
      %c0_38 = arith.constant 0 : index
      %c0_39 = arith.constant 0 : index
      %72 = vector.load %arg20[%c0_38, %c0_39] : memref<16x32xf32, #tpu.memory_space<vmem>>, vector<16x32xf32>
      tpu.vector_store %arg20[%c0_38, %c0_39], %71 {strides = array<i32>} : memref<16x32xf32, #tpu.memory_space<vmem>>, vector<16x32xf32>,
      %73 = arith.truncf %71 : vector<16x32xf32> to vector<16x32xbf16>
      %c0_40 = arith.constant 0 : index
      %c0_41 = arith.constant 0 : index
      %74 = vector.load %arg21[%c0_40, %c0_41] : memref<16x32xbf16, #tpu.memory_space<vmem>>, vector<16x32xbf16>
      tpu.vector_store %arg21[%c0_40, %c0_41], %73 {strides = array<i32>} : memref<16x32xbf16, #tpu.memory_space<vmem>>, vector<16x32xbf16>,
    } else {
    }
    %c2_i32 = arith.constant 2 : i32
    %26 = arith.cmpi eq, %arg0, %c2_i32 : i32
    %c0_i32_21 = arith.constant 0 : i32
    %27 = arith.cmpi eq, %arg1, %c0_i32_21 : i32
    %28 = arith.andi %26, %27 : i1
    %29 = arith.extui %28 : i1 to i32
    %c0_i32_22 = arith.constant 0 : i32
    %30 = arith.cmpi ne, %29, %c0_i32_22 : i32
    scf.if %30 {
      %c0_23 = arith.constant 0 : index
      %c0_24 = arith.constant 0 : index
      %31 = vector.load %arg19[%c0_23, %c0_24] : memref<16x32xf32, #tpu.memory_space<vmem>>, vector<16x32xf32>
      %c0_25 = arith.constant 0 : index
      %c0_26 = arith.constant 0 : index
      %32 = vector.load %arg20[%c0_25, %c0_26] : memref<16x32xf32, #tpu.memory_space<vmem>>, vector<16x32xf32>
      %33 = tpu.concatenate %31, %32 in 1 : vector<16x32xf32>, vector<16x32xf32> -> vector<16x64xf32>
      %c0_27 = arith.constant 0 : index
      %c0_28 = arith.constant 0 : index
      %34 = vector.load %arg6[%c0_27, %c0_28] : memref<2x16xf32, #tpu.memory_space<vmem>>, vector<2x16xf32>
      %cst_29 = arith.constant 5.000000e-01 : f32
      %35 = vector.broadcast %cst_29 : f32 to vector<2x16xf32>
      %36 = arith.cmpf ogt, %34, %35 : vector<2x16xf32>
      %cst_30 = arith.constant 0.000000e+00 : f32
      %37 = vector.broadcast %cst_30 : f32 to vector<2x64xf32>
      %cst_31 = arith.constant 0.000000e+00 : f32
      %38 = vector.broadcast %cst_31 : f32 to vector<2x64xf32>
      %cst_32 = arith.constant 0.000000e+00 : f32
      %39 = vector.broadcast %cst_32 : f32 to vector<2x128xf32>
      %40 = tpu.concatenate %39, %37 in 1 : vector<2x128xf32>, vector<2x64xf32> -> vector<2x192xf32>
      %c0_33 = arith.constant 0 : index
      %c0_34 = arith.constant 0 : index
      %41 = vector.load %arg13[%c0_33, %c0_34] : memref<192x256xf32, #tpu.memory_space<vmem>>, vector<192x256xf32>
      %cst_35 = arith.constant dense<0.000000e+00> : vector<2x256xf32>
      %42 = tpu.matmul %40, %41, %cst_35 {dimension_numbers = #tpu.dot_dimension_numbers<[1], [0], [0], [1], [0, 0, 1, 1], [], []>} : vector<2x192xf32>, vector<192x256xf32>, vector<2x256xf32> -> vector<2x256xf32>
      %c0_36 = arith.constant 0 : index
      %c0_37 = arith.constant 0 : index
      %43 = vector.load %arg14[%c0_36, %c0_37] : memref<1x256xf32, #tpu.memory_space<vmem>>, vector<1x256xf32>
      %44 = vector.broadcast %43 : vector<1x256xf32> to vector<2x256xf32>
      %45 = arith.addf %42, %44 : vector<2x256xf32>
      %46 = vector.extract_strided_slice %45 {offsets = [0, 0], sizes = [2, 64], strides = [1, 1]} : vector<2x256xf32> to vector<2x64xf32>
      %47 = arith.negf %46 : vector<2x64xf32>
      %48 = math.exp %47 : vector<2x64xf32>
      %cst_38 = arith.constant 1.000000e+00 : f32
      %49 = vector.broadcast %cst_38 : f32 to vector<2x64xf32>
      %50 = arith.addf %49, %48 : vector<2x64xf32>
      %51 = arith.divf %49, %50 : vector<2x64xf32>
      %52 = vector.extract_strided_slice %45 {offsets = [0, 64], sizes = [2, 64], strides = [1, 1]} : vector<2x256xf32> to vector<2x64xf32>
      %53 = arith.negf %52 : vector<2x64xf32>
      %54 = math.exp %53 : vector<2x64xf32>
      %cst_39 = arith.constant 1.000000e+00 : f32
      %55 = vector.broadcast %cst_39 : f32 to vector<2x64xf32>
      %56 = arith.addf %55, %54 : vector<2x64xf32>
      %57 = arith.divf %55, %56 : vector<2x64xf32>
      %58 = vector.extract_strided_slice %45 {offsets = [0, 128], sizes = [2, 64], strides = [1, 1]} : vector<2x256xf32> to vector<2x64xf32>
      %59 = math.tanh %58 : vector<2x64xf32>
      %60 = vector.extract_strided_slice %45 {offsets = [0, 192], sizes = [2, 64], strides = [1, 1]} : vector<2x256xf32> to vector<2x64xf32>
      %61 = arith.negf %60 : vector<2x64xf32>
      %62 = math.exp %61 : vector<2x64xf32>
      %cst_40 = arith.constant 1.000000e+00 : f32
      %63 = vector.broadcast %cst_40 : f32 to vector<2x64xf32>
      %64 = arith.addf %63, %62 : vector<2x64xf32>
      %65 = arith.divf %63, %64 : vector<2x64xf32>
      %66 = arith.mulf %57, %38 : vector<2x64xf32>
      %67 = arith.mulf %51, %59 : vector<2x64xf32>
      %68 = arith.addf %66, %67 : vector<2x64xf32>
      %69 = math.tanh %68 : vector<2x64xf32>
      %70 = arith.mulf %65, %69 : vector<2x64xf32>
      %cst_41 = arith.constant dense<0.000000e+00> : vector<2x16xf32>
      %71 = tpu.matmul %70, %33, %cst_41 {dimension_numbers = #tpu.dot_dimension_numbers<[1], [1], [0], [0], [0, 0, 1, 0], [], []>} : vector<2x64xf32>, vector<16x64xf32>, vector<2x16xf32> -> vector<2x16xf32>
      %cst_42 = arith.constant -1.000000e+30 : f32
      %72 = vector.broadcast %cst_42 : f32 to vector<2x16xf32>
      %73 = arith.select %36, %71, %72 : vector<2x16xi1>, vector<2x16xf32>
      %cst_43 = arith.constant dense<0xFF800000> : vector<2xf32>
      %74 = vector.multi_reduction <maximumf>, %73, %cst_43 [1] : vector<2x16xf32> to vector<2xf32>
      %75 = vector.shape_cast %74 : vector<2xf32> to vector<2x1xf32>
      %76 = vector.broadcast %75 : vector<2x1xf32> to vector<2x16xf32>
      %77 = arith.subf %73, %76 : vector<2x16xf32>
      %78 = math.exp %77 : vector<2x16xf32>
      %cst_44 = arith.constant 0.000000e+00 : f32
      %79 = vector.broadcast %cst_44 : f32 to vector<2x16xf32>
      %80 = arith.select %36, %78, %79 : vector<2x16xi1>, vector<2x16xf32>
      %cst_45 = arith.constant dense<0.000000e+00> : vector<2xf32>
      %81 = vector.multi_reduction <add>, %80, %cst_45 [1] : vector<2x16xf32> to vector<2xf32>
      %82 = vector.shape_cast %81 : vector<2xf32> to vector<2x1xf32>
      %cst_46 = arith.constant 9.99999968E-21 : f32
      %83 = vector.broadcast %cst_46 : f32 to vector<2x1xf32>
      %84 = arith.maximumf %82, %83 : vector<2x1xf32>
      %85 = vector.broadcast %84 : vector<2x1xf32> to vector<2x16xf32>
      %86 = arith.divf %80, %85 : vector<2x16xf32>
      %cst_47 = arith.constant dense<0.000000e+00> : vector<2x64xf32>
      %87 = tpu.matmul %86, %33, %cst_47 {dimension_numbers = #tpu.dot_dimension_numbers<[1], [0], [0], [1], [0, 0, 1, 1], [], []>} : vector<2x16xf32>, vector<16x64xf32>, vector<2x64xf32> -> vector<2x64xf32>
      %88 = tpu.concatenate %70, %87 in 1 : vector<2x64xf32>, vector<2x64xf32> -> vector<2x128xf32>
      %89 = tpu.concatenate %88, %70 in 1 : vector<2x128xf32>, vector<2x64xf32> -> vector<2x192xf32>
      %c0_48 = arith.constant 0 : index
      %c0_49 = arith.constant 0 : index
      %90 = vector.load %arg13[%c0_48, %c0_49] : memref<192x256xf32, #tpu.memory_space<vmem>>, vector<192x256xf32>
      %cst_50 = arith.constant dense<0.000000e+00> : vector<2x256xf32>
      %91 = tpu.matmul %89, %90, %cst_50 {dimension_numbers = #tpu.dot_dimension_numbers<[1], [0], [0], [1], [0, 0, 1, 1], [], []>} : vector<2x192xf32>, vector<192x256xf32>, vector<2x256xf32> -> vector<2x256xf32>
      %c0_51 = arith.constant 0 : index
      %c0_52 = arith.constant 0 : index
      %92 = vector.load %arg14[%c0_51, %c0_52] : memref<1x256xf32, #tpu.memory_space<vmem>>, vector<1x256xf32>
      %93 = vector.broadcast %92 : vector<1x256xf32> to vector<2x256xf32>
      %94 = arith.addf %91, %93 : vector<2x256xf32>
      %95 = vector.extract_strided_slice %94 {offsets = [0, 0], sizes = [2, 64], strides = [1, 1]} : vector<2x256xf32> to vector<2x64xf32>
      %96 = arith.negf %95 : vector<2x64xf32>
      %97 = math.exp %96 : vector<2x64xf32>
      %cst_53 = arith.constant 1.000000e+00 : f32
      %98 = vector.broadcast %cst_53 : f32 to vector<2x64xf32>
      %99 = arith.addf %98, %97 : vector<2x64xf32>
      %100 = arith.divf %98, %99 : vector<2x64xf32>
      %101 = vector.extract_strided_slice %94 {offsets = [0, 64], sizes = [2, 64], strides = [1, 1]} : vector<2x256xf32> to vector<2x64xf32>
      %102 = arith.negf %101 : vector<2x64xf32>
      %103 = math.exp %102 : vector<2x64xf32>
      %cst_54 = arith.constant 1.000000e+00 : f32
      %104 = vector.broadcast %cst_54 : f32 to vector<2x64xf32>
      %105 = arith.addf %104, %103 : vector<2x64xf32>
      %106 = arith.divf %104, %105 : vector<2x64xf32>
      %107 = vector.extract_strided_slice %94 {offsets = [0, 128], sizes = [2, 64], strides = [1, 1]} : vector<2x256xf32> to vector<2x64xf32>
      %108 = math.tanh %107 : vector<2x64xf32>
      %109 = vector.extract_strided_slice %94 {offsets = [0, 192], sizes = [2, 64], strides = [1, 1]} : vector<2x256xf32> to vector<2x64xf32>
      %110 = arith.negf %109 : vector<2x64xf32>
      %111 = math.exp %110 : vector<2x64xf32>
      %cst_55 = arith.constant 1.000000e+00 : f32
      %112 = vector.broadcast %cst_55 : f32 to vector<2x64xf32>
      %113 = arith.addf %112, %111 : vector<2x64xf32>
      %114 = arith.divf %112, %113 : vector<2x64xf32>
      %115 = arith.mulf %106, %68 : vector<2x64xf32>
      %116 = arith.mulf %100, %108 : vector<2x64xf32>
      %117 = arith.addf %115, %116 : vector<2x64xf32>
      %118 = math.tanh %117 : vector<2x64xf32>
      %119 = arith.mulf %114, %118 : vector<2x64xf32>
      %cst_56 = arith.constant dense<0.000000e+00> : vector<2x16xf32>
      %120 = tpu.matmul %119, %33, %cst_56 {dimension_numbers = #tpu.dot_dimension_numbers<[1], [1], [0], [0], [0, 0, 1, 0], [], []>} : vector<2x64xf32>, vector<16x64xf32>, vector<2x16xf32> -> vector<2x16xf32>
      %cst_57 = arith.constant -1.000000e+30 : f32
      %121 = vector.broadcast %cst_57 : f32 to vector<2x16xf32>
      %122 = arith.select %36, %120, %121 : vector<2x16xi1>, vector<2x16xf32>
      %cst_58 = arith.constant dense<0xFF800000> : vector<2xf32>
      %123 = vector.multi_reduction <maximumf>, %122, %cst_58 [1] : vector<2x16xf32> to vector<2xf32>
      %124 = vector.shape_cast %123 : vector<2xf32> to vector<2x1xf32>
      %125 = vector.broadcast %124 : vector<2x1xf32> to vector<2x16xf32>
      %126 = arith.subf %122, %125 : vector<2x16xf32>
      %127 = math.exp %126 : vector<2x16xf32>
      %cst_59 = arith.constant 0.000000e+00 : f32
      %128 = vector.broadcast %cst_59 : f32 to vector<2x16xf32>
      %129 = arith.select %36, %127, %128 : vector<2x16xi1>, vector<2x16xf32>
      %cst_60 = arith.constant dense<0.000000e+00> : vector<2xf32>
      %130 = vector.multi_reduction <add>, %129, %cst_60 [1] : vector<2x16xf32> to vector<2xf32>
      %131 = vector.shape_cast %130 : vector<2xf32> to vector<2x1xf32>
      %cst_61 = arith.constant 9.99999968E-21 : f32
      %132 = vector.broadcast %cst_61 : f32 to vector<2x1xf32>
      %133 = arith.maximumf %131, %132 : vector<2x1xf32>
      %134 = vector.broadcast %133 : vector<2x1xf32> to vector<2x16xf32>
      %135 = arith.divf %129, %134 : vector<2x16xf32>
      %cst_62 = arith.constant dense<0.000000e+00> : vector<2x64xf32>
      %136 = tpu.matmul %135, %33, %cst_62 {dimension_numbers = #tpu.dot_dimension_numbers<[1], [0], [0], [1], [0, 0, 1, 1], [], []>} : vector<2x16xf32>, vector<16x64xf32>, vector<2x64xf32> -> vector<2x64xf32>
      %137 = tpu.concatenate %119, %136 in 1 : vector<2x64xf32>, vector<2x64xf32> -> vector<2x128xf32>
      %138 = tpu.concatenate %137, %119 in 1 : vector<2x128xf32>, vector<2x64xf32> -> vector<2x192xf32>
      %c0_63 = arith.constant 0 : index
      %c0_64 = arith.constant 0 : index
      %139 = vector.load %arg13[%c0_63, %c0_64] : memref<192x256xf32, #tpu.memory_space<vmem>>, vector<192x256xf32>
      %cst_65 = arith.constant dense<0.000000e+00> : vector<2x256xf32>
      %140 = tpu.matmul %138, %139, %cst_65 {dimension_numbers = #tpu.dot_dimension_numbers<[1], [0], [0], [1], [0, 0, 1, 1], [], []>} : vector<2x192xf32>, vector<192x256xf32>, vector<2x256xf32> -> vector<2x256xf32>
      %c0_66 = arith.constant 0 : index
      %c0_67 = arith.constant 0 : index
      %141 = vector.load %arg14[%c0_66, %c0_67] : memref<1x256xf32, #tpu.memory_space<vmem>>, vector<1x256xf32>
      %142 = vector.broadcast %141 : vector<1x256xf32> to vector<2x256xf32>
      %143 = arith.addf %140, %142 : vector<2x256xf32>
      %144 = vector.extract_strided_slice %143 {offsets = [0, 0], sizes = [2, 64], strides = [1, 1]} : vector<2x256xf32> to vector<2x64xf32>
      %145 = arith.negf %144 : vector<2x64xf32>
      %146 = math.exp %145 : vector<2x64xf32>
      %cst_68 = arith.constant 1.000000e+00 : f32
      %147 = vector.broadcast %cst_68 : f32 to vector<2x64xf32>
      %148 = arith.addf %147, %146 : vector<2x64xf32>
      %149 = arith.divf %147, %148 : vector<2x64xf32>
      %150 = vector.extract_strided_slice %143 {offsets = [0, 64], sizes = [2, 64], strides = [1, 1]} : vector<2x256xf32> to vector<2x64xf32>
      %151 = arith.negf %150 : vector<2x64xf32>
      %152 = math.exp %151 : vector<2x64xf32>
      %cst_69 = arith.constant 1.000000e+00 : f32
      %153 = vector.broadcast %cst_69 : f32 to vector<2x64xf32>
      %154 = arith.addf %153, %152 : vector<2x64xf32>
      %155 = arith.divf %153, %154 : vector<2x64xf32>
      %156 = vector.extract_strided_slice %143 {offsets = [0, 128], sizes = [2, 64], strides = [1, 1]} : vector<2x256xf32> to vector<2x64xf32>
      %157 = math.tanh %156 : vector<2x64xf32>
      %158 = vector.extract_strided_slice %143 {offsets = [0, 192], sizes = [2, 64], strides = [1, 1]} : vector<2x256xf32> to vector<2x64xf32>
      %159 = arith.negf %158 : vector<2x64xf32>
      %160 = math.exp %159 : vector<2x64xf32>
      %cst_70 = arith.constant 1.000000e+00 : f32
      %161 = vector.broadcast %cst_70 : f32 to vector<2x64xf32>
      %162 = arith.addf %161, %160 : vector<2x64xf32>
      %163 = arith.divf %161, %162 : vector<2x64xf32>
      %164 = arith.mulf %155, %117 : vector<2x64xf32>
      %165 = arith.mulf %149, %157 : vector<2x64xf32>
      %166 = arith.addf %164, %165 : vector<2x64xf32>
      %167 = math.tanh %166 : vector<2x64xf32>
      %168 = arith.mulf %163, %167 : vector<2x64xf32>
      %cst_71 = arith.constant dense<0.000000e+00> : vector<2x16xf32>
      %169 = tpu.matmul %168, %33, %cst_71 {dimension_numbers = #tpu.dot_dimension_numbers<[1], [1], [0], [0], [0, 0, 1, 0], [], []>} : vector<2x64xf32>, vector<16x64xf32>, vector<2x16xf32> -> vector<2x16xf32>
      %cst_72 = arith.constant -1.000000e+30 : f32
      %170 = vector.broadcast %cst_72 : f32 to vector<2x16xf32>
      %171 = arith.select %36, %169, %170 : vector<2x16xi1>, vector<2x16xf32>
      %cst_73 = arith.constant dense<0xFF800000> : vector<2xf32>
      %172 = vector.multi_reduction <maximumf>, %171, %cst_73 [1] : vector<2x16xf32> to vector<2xf32>
      %173 = vector.shape_cast %172 : vector<2xf32> to vector<2x1xf32>
      %174 = vector.broadcast %173 : vector<2x1xf32> to vector<2x16xf32>
      %175 = arith.subf %171, %174 : vector<2x16xf32>
      %176 = math.exp %175 : vector<2x16xf32>
      %cst_74 = arith.constant 0.000000e+00 : f32
      %177 = vector.broadcast %cst_74 : f32 to vector<2x16xf32>
      %178 = arith.select %36, %176, %177 : vector<2x16xi1>, vector<2x16xf32>
      %cst_75 = arith.constant dense<0.000000e+00> : vector<2xf32>
      %179 = vector.multi_reduction <add>, %178, %cst_75 [1] : vector<2x16xf32> to vector<2xf32>
      %180 = vector.shape_cast %179 : vector<2xf32> to vector<2x1xf32>
      %cst_76 = arith.constant 9.99999968E-21 : f32
      %181 = vector.broadcast %cst_76 : f32 to vector<2x1xf32>
      %182 = arith.maximumf %180, %181 : vector<2x1xf32>
      %183 = vector.broadcast %182 : vector<2x1xf32> to vector<2x16xf32>
      %184 = arith.divf %178, %183 : vector<2x16xf32>
      %cst_77 = arith.constant dense<0.000000e+00> : vector<2x64xf32>
      %185 = tpu.matmul %184, %33, %cst_77 {dimension_numbers = #tpu.dot_dimension_numbers<[1], [0], [0], [1], [0, 0, 1, 1], [], []>} : vector<2x16xf32>, vector<16x64xf32>, vector<2x64xf32> -> vector<2x64xf32>
      %186 = tpu.concatenate %168, %185 in 1 : vector<2x64xf32>, vector<2x64xf32> -> vector<2x128xf32>
      %c0_78 = arith.constant 0 : index
      %c0_79 = arith.constant 0 : index
      %187 = vector.load %arg15[%c0_78, %c0_79] : memref<128x128xf32, #tpu.memory_space<vmem>>, vector<128x128xf32>
      %cst_80 = arith.constant dense<0.000000e+00> : vector<2x128xf32>
      %188 = tpu.matmul %186, %187, %cst_80 {dimension_numbers = #tpu.dot_dimension_numbers<[1], [0], [0], [1], [0, 0, 1, 1], [], []>} : vector<2x128xf32>, vector<128x128xf32>, vector<2x128xf32> -> vector<2x128xf32>
      %c0_81 = arith.constant 0 : index
      %c0_82 = arith.constant 0 : index
      %189 = vector.load %arg16[%c0_81, %c0_82] : memref<1x128xf32, #tpu.memory_space<vmem>>, vector<1x128xf32>
      %190 = vector.broadcast %189 : vector<1x128xf32> to vector<2x128xf32>
      %191 = arith.addf %188, %190 : vector<2x128xf32>
      %c0_83 = arith.constant 0 : index
      %c0_84 = arith.constant 0 : index
      %192 = vector.load %arg17[%c0_83, %c0_84] : memref<1x1xf32, #tpu.memory_space<vmem>>, vector<1x1xf32>
      %cst_85 = arith.constant 0.000000e+00 : f32
      %193 = vector.broadcast %cst_85 : f32 to vector<2x128xf32>
      %194 = arith.cmpf oge, %191, %193 : vector<2x128xf32>
      %195 = vector.broadcast %192 : vector<1x1xf32> to vector<2x128xf32>
      %196 = arith.mulf %195, %191 : vector<2x128xf32>
      %197 = arith.select %194, %191, %196 : vector<2x128xi1>, vector<2x128xf32>
      %c0_86 = arith.constant 0 : index
      %c0_87 = arith.constant 0 : index
      %198 = vector.load %arg18[%c0_86, %c0_87] : memref<2x128xf32, #tpu.memory_space<vmem>>, vector<2x128xf32>
      tpu.vector_store %arg18[%c0_86, %c0_87], %197 {strides = array<i32>} : memref<2x128xf32, #tpu.memory_space<vmem>>, vector<2x128xf32>,
    } else {
    }
    return
  }
  func.func @transform_0(%arg0: i32, %arg1: i32) -> (i32, i32) {
    %c0_i32 = arith.constant 0 : i32
    %c0_i32_0 = arith.constant 0 : i32
    %c0_i32_1 = arith.constant 0 : i32
    return %c0_i32, %c0_i32_0 : i32, i32
  }
  func.func @transform_1(%arg0: i32, %arg1: i32) -> (i32, i32) {
    %c0_i32 = arith.constant 0 : i32
    %c0_i32_0 = arith.constant 0 : i32
    return %arg1, %c0_i32 : i32, i32
  }
  func.func @transform_2(%arg0: i32, %arg1: i32) -> (i32, i32) {
    %c0_i32 = arith.constant 0 : i32
    %c0_i32_0 = arith.constant 0 : i32
    return %arg1, %c0_i32 : i32, i32
  }
  func.func @transform_3(%arg0: i32, %arg1: i32) -> (i32, i32) {
    %c0_i32 = arith.constant 0 : i32
    %c0_i32_0 = arith.constant 0 : i32
    return %c0_i32, %arg1 : i32, i32
  }
  func.func @transform_4(%arg0: i32, %arg1: i32) -> (i32, i32) {
    %c0_i32 = arith.constant 0 : i32
    %c0_i32_0 = arith.constant 0 : i32
    %c0_i32_1 = arith.constant 0 : i32
    return %c0_i32, %c0_i32_0 : i32, i32
  }
  func.func @transform_5(%arg0: i32, %arg1: i32) -> (i32, i32) {
    %c0_i32 = arith.constant 0 : i32
    %c0_i32_0 = arith.constant 0 : i32
    %c0_i32_1 = arith.constant 0 : i32
    return %c0_i32, %c0_i32_0 : i32, i32
  }
  func.func @transform_6(%arg0: i32, %arg1: i32) -> (i32, i32) {
    %c0_i32 = arith.constant 0 : i32
    %c0_i32_0 = arith.constant 0 : i32
    %c0_i32_1 = arith.constant 0 : i32
    return %c0_i32, %c0_i32_0 : i32, i32
  }
  func.func @transform_7(%arg0: i32, %arg1: i32) -> (i32, i32) {
    %c0_i32 = arith.constant 0 : i32
    %c0_i32_0 = arith.constant 0 : i32
    %c0_i32_1 = arith.constant 0 : i32
    return %c0_i32, %c0_i32_0 : i32, i32
  }
  func.func @transform_8(%arg0: i32, %arg1: i32) -> (i32, i32) {
    %c0_i32 = arith.constant 0 : i32
    %c0_i32_0 = arith.constant 0 : i32
    %c0_i32_1 = arith.constant 0 : i32
    return %c0_i32, %c0_i32_0 : i32, i32
  }
  func.func @transform_9(%arg0: i32, %arg1: i32) -> (i32, i32) {
    %c0_i32 = arith.constant 0 : i32
    %c0_i32_0 = arith.constant 0 : i32
    %c0_i32_1 = arith.constant 0 : i32
    return %c0_i32, %c0_i32_0 : i32, i32
  }
  func.func @transform_10(%arg0: i32, %arg1: i32) -> (i32, i32) {
    %c0_i32 = arith.constant 0 : i32
    %c0_i32_0 = arith.constant 0 : i32
    %c0_i32_1 = arith.constant 0 : i32
    return %c0_i32, %c0_i32_0 : i32, i32
  }
  func.func @transform_11(%arg0: i32, %arg1: i32) -> (i32, i32) {
    %c0_i32 = arith.constant 0 : i32
    %c0_i32_0 = arith.constant 0 : i32
    %c0_i32_1 = arith.constant 0 : i32
    return %c0_i32, %c0_i32_0 : i32, i32
  }
  func.func @transform_12(%arg0: i32, %arg1: i32) -> (i32, i32) {
    %c0_i32 = arith.constant 0 : i32
    %c0_i32_0 = arith.constant 0 : i32
    %c0_i32_1 = arith.constant 0 : i32
    return %c0_i32, %c0_i32_0 : i32, i32
  }
  func.func @transform_13(%arg0: i32, %arg1: i32) -> (i32, i32) {
    %c0_i32 = arith.constant 0 : i32
    %c0_i32_0 = arith.constant 0 : i32
    %c0_i32_1 = arith.constant 0 : i32
    return %c0_i32, %c0_i32_0 : i32, i32
  }
  func.func @transform_14(%arg0: i32, %arg1: i32) -> (i32, i32) {
    %c0_i32 = arith.constant 0 : i32
    %c0_i32_0 = arith.constant 0 : i32
    %c0_i32_1 = arith.constant 0 : i32
    return %c0_i32, %c0_i32_0 : i32, i32
  }
  func.func @transform_15(%arg0: i32, %arg1: i32) -> (i32, i32) {
    %c0_i32 = arith.constant 0 : i32
    %c0_i32_0 = arith.constant 0 : i32
    %c0_i32_1 = arith.constant 0 : i32
    return %c0_i32, %c0_i32_0 : i32, i32
  }
  func.func @transform_16(%arg0: i32, %arg1: i32) -> (i32, i32) {
    %c0_i32 = arith.constant 0 : i32
    %c0_i32_0 = arith.constant 0 : i32
    %c0_i32_1 = arith.constant 0 : i32
    return %c0_i32, %c0_i32_0 : i32, i32
  }
}

</mosaic_0001>

<llo_original>
// kernel: mpnn_forward.1
$region0: #{mpnn_forward.1}
  #allocation0 [shape = 'u32[]', space=smem, size = 0x4, offset = 0x4, fixed_abs, tag = 'smem constant byte address 0x4 - core index']
  #allocation1 [shape = 'u32[144,128]{1,0:T(1,128)}', space=vmem, size = 0x12000, scoped, tag = 'internal scratch']
  #allocation2 [shape = 'f32[16,32]{1,0:T(8,128)}', space=vmem, size = 0x2000, scoped, tag = 'scratch operand']
  #allocation3 [shape = 'f32[16,32]{1,0:T(8,128)}', space=vmem, size = 0x2000, scoped, tag = 'scratch operand']
  #allocation4 [shape = 'bf16[16,32]{1,0:T(8,128)(2,1)}', space=vmem, size = 0x1000, scoped, tag = 'scratch operand']
  #allocation5 [shape = 'f32[16,32]{1,0:T(8,128)}', space=vmem, size = 0x2000, scoped, tag = 'scratch operand']
  #allocation6 [shape = 'f32[1,1]{1,0:T(1,128)S(1)}', space=vmem, size = 0x200, scoped, tag = 'scoped memory for mpnn_forward.1']
  %s0 = inlined_call_operand.vmem [shape: f32[16,8], index: 0, kind: input, shape index: {}]
  %s1 = inlined_call_operand.vmem [shape: bf16[32,160], index: 1, kind: input, shape index: {}]
  %s2 = inlined_call_operand.vmem [shape: bf16[32,16], index: 2, kind: input, shape index: {}]
  %s3 = inlined_call_operand.vmem [shape: bf16[16,32], index: 3, kind: input, shape index: {}]
  %s4 = inlined_call_operand.vmem [shape: f32[2,16], index: 4, kind: input, shape index: {}]
  %s5 = inlined_call_operand.vmem [shape: f32[8,32], index: 5, kind: input, shape index: {}]
  %s6 = inlined_call_operand.vmem [shape: f32[1,32], index: 6, kind: input, shape index: {}]
  %s7 = inlined_call_operand.vmem [shape: bf16[160,32], index: 7, kind: input, shape index: {}]
  %s8 = inlined_call_operand.vmem [shape: f32[1,32], index: 8, kind: input, shape index: {}]
  %s9 = inlined_call_operand.vmem [shape: f32[64,192], index: 9, kind: input, shape index: {}]
  %s10 = inlined_call_operand.vmem [shape: f32[1,192], index: 10, kind: input, shape index: {}]
  %s11 = inlined_call_operand.vmem [shape: f32[192,256], index: 11, kind: input, shape index: {}]
  %s12 = inlined_call_operand.vmem [shape: f32[1,256], index: 12, kind: input, shape index: {}]
  %s13 = inlined_call_operand.vmem [shape: f32[128,128], index: 13, kind: input, shape index: {}]
  %s14 = inlined_call_operand.vmem [shape: f32[1,128], index: 14, kind: input, shape index: {}]
  %s15 = inlined_call_operand.<no memory space> [shape: f32[1,1], index: 15, kind: input, shape index: {}]
  %s16 = inlined_call_operand.hbm [shape: f32[2,128], index: 16, kind: output, shape index: {}]
  %s17 = sld [smem:[#allocation0]]
  $region113: #{mpnn_forward.1} parent=0
    _
  %s19 = ssub.s32 1, %s17
  %s20 = scalar_select 0, %s19, %s17
  %v21 = vstv %s15
  %22 = vst [vmem:[#allocation6] sm:$0x1] %v21
  $region1: #{mpnn_forward.1} parent=0
    #allocation7 [shape = 'u8[1024]{0}', space=vmem, size = 0x400, scoped, tag = 'output window, operand 0, single buffered']
    #allocation8 [shape = 's32[2]{0}', space=sflag, size = 0x8, scoped, tag = 'scoped memory for mpnn_forward.1']
    %23 = vsyncpa [#allocation8], 0
    loop: start=0, step=1, limit=5
    $region2: #{mpnn_forward.1} parent=1 // loop_pre_header
      _
    $region3: #{mpnn_forward.1} parent=1 // loop_header
      %s25 = sphi 0, %s29
      %p26 = scmp.ge.s32.totalorder %s25, 5
      %s32 = sphi 0, %s44
      %s33 = sphi 0, %s40
      %s34 = sphi 0, %s32
      %s35 = sphi 0, %s33
      %s36 = sphi 0, %s34
      %s37 = sphi 0, %s35
      %s45 = sphi 0, %s45
      %s47 = sphi 0, %s45
      %s48 = sphi 0, %s47
      %s62 = sphi 0, %s48
      %s68 = sphi 0, %s70
      %s71 = sphi 0, %s68
      %s72 = sphi 0, %s71
      %s88 = sphi 0, %s72
      %s94 = sphi 0, %s96
      %s97 = sphi 0, %s94
      %s98 = sphi 0, %s97
      %s114 = sphi 0, %s98
      %s120 = sphi 0, %s122
      %s123 = sphi 0, %s120
      %s124 = sphi 0, %s123
      %s140 = sphi 0, %s124
      %s144 = sphi 0, %s144
      %s146 = sphi 0, %s144
      %s147 = sphi 0, %s146
      %s161 = sphi 0, %s147
      %s165 = sphi 0, %s165
      %s167 = sphi 0, %s165
      %s168 = sphi 0, %s167
      %s182 = sphi 0, %s168
      %s186 = sphi 0, %s186
      %s188 = sphi 0, %s186
      %s189 = sphi 0, %s188
      %s203 = sphi 0, %s189
      %s207 = sphi 0, %s207
      %s209 = sphi 0, %s207
      %s210 = sphi 0, %s209
      %s224 = sphi 0, %s210
      %s228 = sphi 0, %s228
      %s230 = sphi 0, %s228
      %s231 = sphi 0, %s230
      %s245 = sphi 0, %s231
      %s249 = sphi 0, %s249
      %s251 = sphi 0, %s249
      %s252 = sphi 0, %s251
      %s266 = sphi 0, %s252
      %s270 = sphi 0, %s270
      %s272 = sphi 0, %s270
      %s273 = sphi 0, %s272
      %s287 = sphi 0, %s273
      %s291 = sphi 0, %s291
      %s293 = sphi 0, %s291
      %s294 = sphi 0, %s293
      %s308 = sphi 0, %s294
      %s312 = sphi 0, %s312
      %s314 = sphi 0, %s312
      %s315 = sphi 0, %s314
      %s329 = sphi 0, %s315
      %s333 = sphi 0, %s333
      %s335 = sphi 0, %s333
      %s336 = sphi 0, %s335
      %s350 = sphi 0, %s336
      %s354 = sphi 0, %s354
      %s356 = sphi 0, %s354
      %s357 = sphi 0, %s356
      %s371 = sphi 0, %s357
      %s375 = sphi 0, %s375
      %s377 = sphi 0, %s375
      %s378 = sphi 0, %s377
      %s392 = sphi 0, %s378
      %s396 = sphi 0, %s396
      %s398 = sphi 0, %s396
      %s399 = sphi 0, %s398
      %s413 = sphi 0, %s399
    $region4: #{mpnn_forward.1} parent=1 // loop_header_branch
      %28 = sbr.rel (%p26) target = $region8
    $region5: #{mpnn_forward.1} parent=1 // loop_body
      %s30 = ssub.s32 %s25, 1
      %s31 = ssub.s32 %s25, 2
      %s38 = sadd.s32 1, %s33
      %p39 = scmp.ge.s32.totalorder %s38, 1
      %s40 = scalar_select %p39, 0, %s38
      %s41 = sadd.s32 1, %s32
      %s42 = scalar_select %p39, %s41, %s32
      %p43 = scmp.ge.s32.totalorder %s42, 3
      %s44 = scalar_select %p43, 0, %s42
      %s46 = sadd.s32 %s45, 1
      %p49 = scmp.eq.s32.totalorder %s25, 2
      %p50 = scmp.ne.s32.totalorder %s45, %s47
      %p51 = scmp.eq.s32.totalorder %s25, 0
      %p52 = por %p50, %p51
      %p53 = scmp.ne.s32.totalorder %s45, %s47
      %p54 = scmp.eq.s32.totalorder %s30, 2
      %p55 = por %p53, %p54
      %p56 = scmp.ne.s32.totalorder %s47, %s48
      %p57 = scmp.eq.s32.totalorder %s30, 0
      %p58 = por %p56, %p57
      %p59 = scmp.ne.s32.totalorder %s47, %s48
      %p60 = scmp.eq.s32.totalorder %s31, 2
      %p61 = por %p59, %p60
      %p63 = scmp.ne.s32.totalorder %s48, %s62
      %p64 = scmp.eq.s32.totalorder %s31, 0
      %p65 = por %p63, %p64
      %s66 = ssub.s32 %s33, %s40
      %p67 = scmp.eq.s32.totalorder %s66, 0
      %s69 = sadd.s32 %s68, 1
      %s70 = scalar_select %p67, %s68, %s69
      %p73 = pneg %p67
      %p74 = scmp.eq.s32.totalorder %s25, 2
      %p75 = por %p73, %p74
      %p76 = scmp.ne.s32.totalorder %s68, %s71
      %p77 = scmp.eq.s32.totalorder %s25, 0
      %p78 = por %p76, %p77
      %p79 = scmp.ne.s32.totalorder %s68, %s71
      %p80 = scmp.eq.s32.totalorder %s30, 2
      %p81 = por %p79, %p80
      %p82 = scmp.ne.s32.totalorder %s71, %s72
      %p83 = scmp.eq.s32.totalorder %s30, 0
      %p84 = por %p82, %p83
      %p85 = scmp.ne.s32.totalorder %s71, %s72
      %p86 = scmp.eq.s32.totalorder %s31, 2
      %p87 = por %p85, %p86
      %p89 = scmp.ne.s32.totalorder %s72, %s88
      %p90 = scmp.eq.s32.totalorder %s31, 0
      %p91 = por %p89, %p90
      %s92 = ssub.s32 %s33, %s40
      %p93 = scmp.eq.s32.totalorder %s92, 0
      %s95 = sadd.s32 %s94, 1
      %s96 = scalar_select %p93, %s94, %s95
      %p99 = pneg %p93
      %p100 = scmp.eq.s32.totalorder %s25, 2
      %p101 = por %p99, %p100
      %p102 = scmp.ne.s32.totalorder %s94, %s97
      %p103 = scmp.eq.s32.totalorder %s25, 0
      %p104 = por %p102, %p103
      %p105 = scmp.ne.s32.totalorder %s94, %s97
      %p106 = scmp.eq.s32.totalorder %s30, 2
      %p107 = por %p105, %p106
      %p108 = scmp.ne.s32.totalorder %s97, %s98
      %p109 = scmp.eq.s32.totalorder %s30, 0
      %p110 = por %p108, %p109
      %p111 = scmp.ne.s32.totalorder %s97, %s98
      %p112 = scmp.eq.s32.totalorder %s31, 2
      %p113 = por %p111, %p112
      %p115 = scmp.ne.s32.totalorder %s98, %s114
      %p116 = scmp.eq.s32.totalorder %s31, 0
      %p117 = por %p115, %p116
      %s118 = ssub.s32 %s33, %s40
      %p119 = scmp.eq.s32.totalorder %s118, 0
      %s121 = sadd.s32 %s120, 1
      %s122 = scalar_select %p119, %s120, %s121
      %p125 = pneg %p119
      %p126 = scmp.eq.s32.totalorder %s25, 2
      %p127 = por %p125, %p126
      %p128 = scmp.ne.s32.totalorder %s120, %s123
      %p129 = scmp.eq.s32.totalorder %s25, 0
      %p130 = por %p128, %p129
      %p131 = scmp.ne.s32.totalorder %s120, %s123
      %p132 = scmp.eq.s32.totalorder %s30, 2
      %p133 = por %p131, %p132
      %p134 = scmp.ne.s32.totalorder %s123, %s124
      %p135 = scmp.eq.s32.totalorder %s30, 0
      %p136 = por %p134, %p135
      %p137 = scmp.ne.s32.totalorder %s123, %s124
      %p138 = scmp.eq.s32.totalorder %s31, 2
      %p139 = por %p137, %p138
      %p141 = scmp.ne.s32.totalorder %s124, %s140
      %p142 = scmp.eq.s32.totalorder %s31, 0
      %p143 = por %p141, %p142
      %s145 = sadd.s32 %s144, 1
      %p148 = scmp.eq.s32.totalorder %s25, 2
      %p149 = scmp.ne.s32.totalorder %s144, %s146
      %p150 = scmp.eq.s32.totalorder %s25, 0
      %p151 = por %p149, %p150
      %p152 = scmp.ne.s32.totalorder %s144, %s146
      %p153 = scmp.eq.s32.totalorder %s30, 2
      %p154 = por %p152, %p153
      %p155 = scmp.ne.s32.totalorder %s146, %s147
      %p156 = scmp.eq.s32.totalorder %s30, 0
      %p157 = por %p155, %p156
      %p158 = scmp.ne.s32.totalorder %s146, %s147
      %p159 = scmp.eq.s32.totalorder %s31, 2
      %p160 = por %p158, %p159
      %p162 = scmp.ne.s32.totalorder %s147, %s161
      %p163 = scmp.eq.s32.totalorder %s31, 0
      %p164 = por %p162, %p163
      %s166 = sadd.s32 %s165, 1
      %p169 = scmp.eq.s32.totalorder %s25, 2
      %p170 = scmp.ne.s32.totalorder %s165, %s167
      %p171 = scmp.eq.s32.totalorder %s25, 0
      %p172 = por %p170, %p171
      %p173 = scmp.ne.s32.totalorder %s165, %s167
      %p174 = scmp.eq.s32.totalorder %s30, 2
      %p175 = por %p173, %p174
      %p176 = scmp.ne.s32.totalorder %s167, %s168
      %p177 = scmp.eq.s32.totalorder %s30, 0
      %p178 = por %p176, %p177
      %p179 = scmp.ne.s32.totalorder %s167, %s168
      %p180 = scmp.eq.s32.totalorder %s31, 2
      %p181 = por %p179, %p180
      %p183 = scmp.ne.s32.totalorder %s168, %s182
      %p184 = scmp.eq.s32.totalorder %s31, 0
      %p185 = por %p183, %p184
      %s187 = sadd.s32 %s186, 1
      %p190 = scmp.eq.s32.totalorder %s25, 2
      %p191 = scmp.ne.s32.totalorder %s186, %s188
      %p192 = scmp.eq.s32.totalorder %s25, 0
      %p193 = por %p191, %p192
      %p194 = scmp.ne.s32.totalorder %s186, %s188
      %p195 = scmp.eq.s32.totalorder %s30, 2
      %p196 = por %p194, %p195
      %p197 = scmp.ne.s32.totalorder %s188, %s189
      %p198 = scmp.eq.s32.totalorder %s30, 0
      %p199 = por %p197, %p198
      %p200 = scmp.ne.s32.totalorder %s188, %s189
      %p201 = scmp.eq.s32.totalorder %s31, 2
      %p202 = por %p200, %p201
      %p204 = scmp.ne.s32.totalorder %s189, %s203
      %p205 = scmp.eq.s32.totalorder %s31, 0
      %p206 = por %p204, %p205
      %s208 = sadd.s32 %s207, 1
      %p211 = scmp.eq.s32.totalorder %s25, 2
      %p212 = scmp.ne.s32.totalorder %s207, %s209
      %p213 = scmp.eq.s32.totalorder %s25, 0
      %p214 = por %p212, %p213
      %p215 = scmp.ne.s32.totalorder %s207, %s209
      %p216 = scmp.eq.s32.totalorder %s30, 2
      %p217 = por %p215, %p216
      %p218 = scmp.ne.s32.totalorder %s209, %s210
      %p219 = scmp.eq.s32.totalorder %s30, 0
      %p220 = por %p218, %p219
      %p221 = scmp.ne.s32.totalorder %s209, %s210
      %p222 = scmp.eq.s32.totalorder %s31, 2
      %p223 = por %p221, %p222
      %p225 = scmp.ne.s32.totalorder %s210, %s224
      %p226 = scmp.eq.s32.totalorder %s31, 0
      %p227 = por %p225, %p226
      %s229 = sadd.s32 %s228, 1
      %p232 = scmp.eq.s32.totalorder %s25, 2
      %p233 = scmp.ne.s32.totalorder %s228, %s230
      %p234 = scmp.eq.s32.totalorder %s25, 0
      %p235 = por %p233, %p234
      %p236 = scmp.ne.s32.totalorder %s228, %s230
      %p237 = scmp.eq.s32.totalorder %s30, 2
      %p238 = por %p236, %p237
      %p239 = scmp.ne.s32.totalorder %s230, %s231
      %p240 = scmp.eq.s32.totalorder %s30, 0
      %p241 = por %p239, %p240
      %p242 = scmp.ne.s32.totalorder %s230, %s231
      %p243 = scmp.eq.s32.totalorder %s31, 2
      %p244 = por %p242, %p243
      %p246 = scmp.ne.s32.totalorder %s231, %s245
      %p247 = scmp.eq.s32.totalorder %s31, 0
      %p248 = por %p246, %p247
      %s250 = sadd.s32 %s249, 1
      %p253 = scmp.eq.s32.totalorder %s25, 2
      %p254 = scmp.ne.s32.totalorder %s249, %s251
      %p255 = scmp.eq.s32.totalorder %s25, 0
      %p256 = por %p254, %p255
      %p257 = scmp.ne.s32.totalorder %s249, %s251
      %p258 = scmp.eq.s32.totalorder %s30, 2
      %p259 = por %p257, %p258
      %p260 = scmp.ne.s32.totalorder %s251, %s252
      %p261 = scmp.eq.s32.totalorder %s30, 0
      %p262 = por %p260, %p261
      %p263 = scmp.ne.s32.totalorder %s251, %s252
      %p264 = scmp.eq.s32.totalorder %s31, 2
      %p265 = por %p263, %p264
      %p267 = scmp.ne.s32.totalorder %s252, %s266
      %p268 = scmp.eq.s32.totalorder %s31, 0
      %p269 = por %p267, %p268
      %s271 = sadd.s32 %s270, 1
      %p274 = scmp.eq.s32.totalorder %s25, 2
      %p275 = scmp.ne.s32.totalorder %s270, %s272
      %p276 = scmp.eq.s32.totalorder %s25, 0
      %p277 = por %p275, %p276
      %p278 = scmp.ne.s32.totalorder %s270, %s272
      %p279 = scmp.eq.s32.totalorder %s30, 2
      %p280 = por %p278, %p279
      %p281 = scmp.ne.s32.totalorder %s272, %s273
      %p282 = scmp.eq.s32.totalorder %s30, 0
      %p283 = por %p281, %p282
      %p284 = scmp.ne.s32.totalorder %s272, %s273
      %p285 = scmp.eq.s32.totalorder %s31, 2
      %p286 = por %p284, %p285
      %p288 = scmp.ne.s32.totalorder %s273, %s287
      %p289 = scmp.eq.s32.totalorder %s31, 0
      %p290 = por %p288, %p289
      %s292 = sadd.s32 %s291, 1
      %p295 = scmp.eq.s32.totalorder %s25, 2
      %p296 = scmp.ne.s32.totalorder %s291, %s293
      %p297 = scmp.eq.s32.totalorder %s25, 0
      %p298 = por %p296, %p297
      %p299 = scmp.ne.s32.totalorder %s291, %s293
      %p300 = scmp.eq.s32.totalorder %s30, 2
      %p301 = por %p299, %p300
      %p302 = scmp.ne.s32.totalorder %s293, %s294
      %p303 = scmp.eq.s32.totalorder %s30, 0
      %p304 = por %p302, %p303
      %p305 = scmp.ne.s32.totalorder %s293, %s294
      %p306 = scmp.eq.s32.totalorder %s31, 2
      %p307 = por %p305, %p306
      %p309 = scmp.ne.s32.totalorder %s294, %s308
      %p310 = scmp.eq.s32.totalorder %s31, 0
      %p311 = por %p309, %p310
      %s313 = sadd.s32 %s312, 1
      %p316 = scmp.eq.s32.totalorder %s25, 2
      %p317 = scmp.ne.s32.totalorder %s312, %s314
      %p318 = scmp.eq.s32.totalorder %s25, 0
      %p319 = por %p317, %p318
      %p320 = scmp.ne.s32.totalorder %s312, %s314
      %p321 = scmp.eq.s32.totalorder %s30, 2
      %p322 = por %p320, %p321
      %p323 = scmp.ne.s32.totalorder %s314, %s315
      %p324 = scmp.eq.s32.totalorder %s30, 0
      %p325 = por %p323, %p324
      %p326 = scmp.ne.s32.totalorder %s314, %s315
      %p327 = scmp.eq.s32.totalorder %s31, 2
      %p328 = por %p326, %p327
      %p330 = scmp.ne.s32.totalorder %s315, %s329
      %p331 = scmp.eq.s32.totalorder %s31, 0
      %p332 = por %p330, %p331
      %s334 = sadd.s32 %s333, 1
      %p337 = scmp.eq.s32.totalorder %s25, 2
      %p338 = scmp.ne.s32.totalorder %s333, %s335
      %p339 = scmp.eq.s32.totalorder %s25, 0
      %p340 = por %p338, %p339
      %p341 = scmp.ne.s32.totalorder %s333, %s335
      %p342 = scmp.eq.s32.totalorder %s30, 2
      %p343 = por %p341, %p342
      %p344 = scmp.ne.s32.totalorder %s335, %s336
      %p345 = scmp.eq.s32.totalorder %s30, 0
      %p346 = por %p344, %p345
      %p347 = scmp.ne.s32.totalorder %s335, %s336
      %p348 = scmp.eq.s32.totalorder %s31, 2
      %p349 = por %p347, %p348
      %p351 = scmp.ne.s32.totalorder %s336, %s350
      %p352 = scmp.eq.s32.totalorder %s31, 0
      %p353 = por %p351, %p352
      %s355 = sadd.s32 %s354, 1
      %p358 = scmp.eq.s32.totalorder %s25, 2
      %p359 = scmp.ne.s32.totalorder %s354, %s356
      %p360 = scmp.eq.s32.totalorder %s25, 0
      %p361 = por %p359, %p360
      %p362 = scmp.ne.s32.totalorder %s354, %s356
      %p363 = scmp.eq.s32.totalorder %s30, 2
      %p364 = por %p362, %p363
      %p365 = scmp.ne.s32.totalorder %s356, %s357
      %p366 = scmp.eq.s32.totalorder %s30, 0
      %p367 = por %p365, %p366
      %p368 = scmp.ne.s32.totalorder %s356, %s357
      %p369 = scmp.eq.s32.totalorder %s31, 2
      %p370 = por %p368, %p369
      %p372 = scmp.ne.s32.totalorder %s357, %s371
      %p373 = scmp.eq.s32.totalorder %s31, 0
      %p374 = por %p372, %p373
      %s376 = sadd.s32 %s375, 1
      %p379 = scmp.eq.s32.totalorder %s25, 2
      %p380 = scmp.ne.s32.totalorder %s375, %s377
      %p381 = scmp.eq.s32.totalorder %s25, 0
      %p382 = por %p380, %p381
      %p383 = scmp.ne.s32.totalorder %s375, %s377
      %p384 = scmp.eq.s32.totalorder %s30, 2
      %p385 = por %p383, %p384
      %p386 = scmp.ne.s32.totalorder %s377, %s378
      %p387 = scmp.eq.s32.totalorder %s30, 0
      %p388 = por %p386, %p387
      %p389 = scmp.ne.s32.totalorder %s377, %s378
      %p390 = scmp.eq.s32.totalorder %s31, 2
      %p391 = por %p389, %p390
      %p393 = scmp.ne.s32.totalorder %s378, %s392
      %p394 = scmp.eq.s32.totalorder %s31, 0
      %p395 = por %p393, %p394
      %s397 = sadd.s32 %s396, 1
      %p400 = scmp.eq.s32.totalorder %s25, 2
      %p401 = scmp.ne.s32.totalorder %s396, %s398
      %p402 = scmp.eq.s32.totalorder %s25, 0
      %p403 = por %p401, %p402
      %p404 = scmp.ne.s32.totalorder %s396, %s398
      %p405 = scmp.eq.s32.totalorder %s30, 2
      %p406 = por %p404, %p405
      %p407 = scmp.ne.s32.totalorder %s398, %s399
      %p408 = scmp.eq.s32.totalorder %s30, 0
      %p409 = por %p407, %p408
      %p410 = scmp.ne.s32.totalorder %s398, %s399
      %p411 = scmp.eq.s32.totalorder %s31, 2
      %p412 = por %p410, %p411
      %p414 = scmp.ne.s32.totalorder %s399, %s413
      %p415 = scmp.eq.s32.totalorder %s31, 0
      %p416 = por %p414, %p415
      %p417 = scmp.le.s32.totalorder 1, %s25
      %p418 = scmp.lt.s32.totalorder %s25, 4
      %p419 = pnand %p417, %p418
      %p420 = pneg %p419
      // Predicated region
      $region9: #{mpnn_forward.1} parent=5 // pred_check
        _
      $region10: #{mpnn_forward.1} parent=5 // pred_check_branch
        %422 = sbr.rel (%p419) target = $region12
      $region11: #{mpnn_forward.1} parent=5 // pred_region
        %s423 = ssub.s32 %s25, 1
        // Predicated region
        $region13: #{mpnn_forward.1} parent=11 // pred_check
          %p424 = pneg %p58
        $region14: #{mpnn_forward.1} parent=11 // pred_check_branch
          %426 = sbr.rel (%p424) target = $region16
        $region15: #{mpnn_forward.1} parent=11 // pred_region
          _
        $region16: #{mpnn_forward.1} parent=11 // pred_fallthru
          _
        // Predicated region
        $region17: #{mpnn_forward.1} parent=11 // pred_check
          %p427 = pneg %p84
        $region18: #{mpnn_forward.1} parent=11 // pred_check_branch
          %429 = sbr.rel (%p427) target = $region20
        $region19: #{mpnn_forward.1} parent=11 // pred_region
          %s430 = smul.u32 4, %s35
          %p431 = scmp.lt.s32.totalorder %s430, 3
          %s432 = scalar_select %p431, %s430, 3
          %s433 = smul.addr %s432, 2
          %s434 = smul.addr %s433, 4
          %s435 = scalar_lea.vmem %s1, %s434
          %s436 = smul.u32 4, %s35
        $region20: #{mpnn_forward.1} parent=11 // pred_fallthru
          _
        // Predicated region
        $region21: #{mpnn_forward.1} parent=11 // pred_check
          %p437 = pneg %p110
        $region22: #{mpnn_forward.1} parent=11 // pred_check_branch
          %439 = sbr.rel (%p437) target = $region24
        $region23: #{mpnn_forward.1} parent=11 // pred_region
          %s440 = smul.u32 4, %s35
          %p441 = scmp.lt.s32.totalorder %s440, 3
          %s442 = scalar_select %p441, %s440, 3
          %s443 = smul.addr %s442, 4
          %s444 = scalar_lea.vmem %s2, %s443
          %s445 = smul.u32 4, %s35
        $region24: #{mpnn_forward.1} parent=11 // pred_fallthru
          _
        // Predicated region
        $region25: #{mpnn_forward.1} parent=11 // pred_check
          %p446 = pneg %p136
        $region26: #{mpnn_forward.1} parent=11 // pred_check_branch
          %448 = sbr.rel (%p446) target = $region28
        $region27: #{mpnn_forward.1} parent=11 // pred_region
          %p449 = scmp.lt.s32.totalorder %s35, 0
          %s450 = scalar_select %p449, %s35, 0
          %s451 = smul.addr %s450, 4
          %s452 = scalar_lea.vmem %s3, %s451
        $region28: #{mpnn_forward.1} parent=11 // pred_fallthru
          _
        // Predicated region
        $region29: #{mpnn_forward.1} parent=11 // pred_check
          %p453 = pneg %p157
        $region30: #{mpnn_forward.1} parent=11 // pred_check_branch
          %455 = sbr.rel (%p453) target = $region32
        $region31: #{mpnn_forward.1} parent=11 // pred_region
          _
        $region32: #{mpnn_forward.1} parent=11 // pred_fallthru
          _
        // Predicated region
        $region33: #{mpnn_forward.1} parent=11 // pred_check
          %p456 = pneg %p178
        $region34: #{mpnn_forward.1} parent=11 // pred_check_branch
          %458 = sbr.rel (%p456) target = $region36
        $region35: #{mpnn_forward.1} parent=11 // pred_region
          _
        $region36: #{mpnn_forward.1} parent=11 // pred_fallthru
          _
        // Predicated region
        $region37: #{mpnn_forward.1} parent=11 // pred_check
          %p459 = pneg %p199
        $region38: #{mpnn_forward.1} parent=11 // pred_check_branch
          %461 = sbr.rel (%p459) target = $region40
        $region39: #{mpnn_forward.1} parent=11 // pred_region
          _
        $region40: #{mpnn_forward.1} parent=11 // pred_fallthru
          _
        // Predicated region
        $region41: #{mpnn_forward.1} parent=11 // pred_check
          %p462 = pneg %p220
        $region42: #{mpnn_forward.1} parent=11 // pred_check_branch
          %464 = sbr.rel (%p462) target = $region44
        $region43: #{mpnn_forward.1} parent=11 // pred_region
          _
        $region44: #{mpnn_forward.1} parent=11 // pred_fallthru
          _
        // Predicated region
        $region45: #{mpnn_forward.1} parent=11 // pred_check
          %p465 = pneg %p241
        $region46: #{mpnn_forward.1} parent=11 // pred_check_branch
          %467 = sbr.rel (%p465) target = $region48
        $region47: #{mpnn_forward.1} parent=11 // pred_region
          _
        $region48: #{mpnn_forward.1} parent=11 // pred_fallthru
          _
        // Predicated region
        $region49: #{mpnn_forward.1} parent=11 // pred_check
          %p468 = pneg %p262
        $region50: #{mpnn_forward.1} parent=11 // pred_check_branch
          %470 = sbr.rel (%p468) target = $region52
        $region51: #{mpnn_forward.1} parent=11 // pred_region
          _
        $region52: #{mpnn_forward.1} parent=11 // pred_fallthru
          _
        // Predicated region
        $region53: #{mpnn_forward.1} parent=11 // pred_check
          %p471 = pneg %p283
        $region54: #{mpnn_forward.1} parent=11 // pred_check_branch
          %473 = sbr.rel (%p471) target = $region56
        $region55: #{mpnn_forward.1} parent=11 // pred_region
          _
        $region56: #{mpnn_forward.1} parent=11 // pred_fallthru
          _
        // Predicated region
        $region57: #{mpnn_forward.1} parent=11 // pred_check
          %p474 = pneg %p304
        $region58: #{mpnn_forward.1} parent=11 // pred_check_branch
          %476 = sbr.rel (%p474) target = $region60
        $region59: #{mpnn_forward.1} parent=11 // pred_region
          _
        $region60: #{mpnn_forward.1} parent=11 // pred_fallthru
          _
        // Predicated region
        $region61: #{mpnn_forward.1} parent=11 // pred_check
          %p477 = pneg %p325
        $region62: #{mpnn_forward.1} parent=11 // pred_check_branch
          %479 = sbr.rel (%p477) target = $region64
        $region63: #{mpnn_forward.1} parent=11 // pred_region
          _
        $region64: #{mpnn_forward.1} parent=11 // pred_fallthru
          _
        // Predicated region
        $region65: #{mpnn_forward.1} parent=11 // pred_check
          %p480 = pneg %p346
        $region66: #{mpnn_forward.1} parent=11 // pred_check_branch
          %482 = sbr.rel (%p480) target = $region68
        $region67: #{mpnn_forward.1} parent=11 // pred_region
          _
        $region68: #{mpnn_forward.1} parent=11 // pred_fallthru
          _
        // Predicated region
        $region69: #{mpnn_forward.1} parent=11 // pred_check
          %p483 = pneg %p367
        $region70: #{mpnn_forward.1} parent=11 // pred_check_branch
          %485 = sbr.rel (%p483) target = $region72
        $region71: #{mpnn_forward.1} parent=11 // pred_region
          _
        $region72: #{mpnn_forward.1} parent=11 // pred_fallthru
          _
        // Predicated region
        $region73: #{mpnn_forward.1} parent=11 // pred_check
          %p486 = pneg %p388
        $region74: #{mpnn_forward.1} parent=11 // pred_check_branch
          %488 = sbr.rel (%p486) target = $region76
        $region75: #{mpnn_forward.1} parent=11 // pred_region
          _
        $region76: #{mpnn_forward.1} parent=11 // pred_fallthru
          _
      $region12: #{mpnn_forward.1} parent=5 // pred_fallthru
        _
      %p489 = scmp.lt.s32.totalorder %s25, 3
      // Predicated region
      $region77: #{mpnn_forward.1} parent=5 // pred_check
        %p490 = pneg %p489
      $region78: #{mpnn_forward.1} parent=5 // pred_check_branch
        %492 = sbr.rel (%p490) target = $region80
      $region79: #{mpnn_forward.1} parent=5 // pred_region
        _
      $region80: #{mpnn_forward.1} parent=5 // pred_fallthru
        _
      %p493 = scmp.le.s32.totalorder 1, %s25
      %p494 = scmp.lt.s32.totalorder %s25, 4
      %p495 = pnand %p493, %p494
      %p496 = pneg %p495
      // Predicated region
      $region81: #{mpnn_forward.1} parent=5 // pred_check
        _
      $region82: #{mpnn_forward.1} parent=5 // pred_check_branch
        %498 = sbr.rel (%p495) target = $region84
      $region83: #{mpnn_forward.1} parent=5 // pred_region
        %s499 = ssub.s32 %s25, 1
        %p500 = pneg %p58
        %p501 = pneg %p55
        %s502 = smul.u32 4, %s35
        %p503 = scmp.lt.s32.totalorder %s502, 3
        %s504 = scalar_select %p503, %s502, 3
        %s505 = smul.addr %s504, 2
        %s506 = smul.addr %s505, 4
        %s507 = scalar_lea.vmem %s1, %s506
        %p508 = pneg %p84
        %p509 = pneg %p81
        %s510 = smul.u32 4, %s35
        %p511 = scmp.lt.s32.totalorder %s510, 3
        %s512 = scalar_select %p511, %s510, 3
        %s513 = smul.addr %s512, 4
        %s514 = scalar_lea.vmem %s2, %s513
        %p515 = pneg %p110
        %p516 = pneg %p107
        %p517 = scmp.lt.s32.totalorder %s35, 0
        %s518 = scalar_select %p517, %s35, 0
        %s519 = smul.addr %s518, 4
        %s520 = scalar_lea.vmem %s3, %s519
        %p521 = pneg %p136
        %p522 = pneg %p133
        %p523 = pneg %p157
        %p524 = pneg %p154
        %p525 = pneg %p178
        %p526 = pneg %p175
        %p527 = pneg %p199
        %p528 = pneg %p196
        %p529 = pneg %p220
        %p530 = pneg %p217
        %p531 = pneg %p241
        %p532 = pneg %p238
        %p533 = pneg %p262
        %p534 = pneg %p259
        %p535 = pneg %p283
        %p536 = pneg %p280
        %p537 = pneg %p304
        %p538 = pneg %p301
        %p539 = pneg %p325
        %p540 = pneg %p322
        %p541 = pneg %p346
        %p542 = pneg %p343
        %p543 = pneg %p367
        %p544 = pneg %p364
        %p545 = pneg %p388
        %p546 = pneg %p385
        %p547 = pneg %p409
        %p548 = pneg %p406
        %s549 = smul.u32 4, %s35
        %p550 = scmp.lt.s32.totalorder %s549, 3
        %s551 = scalar_select %p550, %s549, 3
        %s552 = smul.addr %s551, 2
        %s553 = smul.addr %s552, 4
        %s554 = scalar_lea.vmem %s1, %s553
        %s555 = smul.u32 4, %s35
        %s556 = smul.u32 4, %s35
        %p557 = scmp.lt.s32.totalorder %s556, 3
        %s558 = scalar_select %p557, %s556, 3
        %s559 = smul.addr %s558, 4
        %s560 = scalar_lea.vmem %s2, %s559
        %s561 = smul.u32 4, %s35
        %p562 = scmp.lt.s32.totalorder %s35, 0
        %s563 = scalar_select %p562, %s35, 0
        %s564 = smul.addr %s563, 4
        %s565 = scalar_lea.vmem %s3, %s564
        %p567 = scmp.eq.s32.totalorder %s34, 0
        %p568 = scmp.eq.s32.totalorder %s35, 0
        %p569 = pnand %p567, %p568
        %p570 = pneg %p569
        // Predicated region
        $region85: #{mpnn_forward.1} parent=83 // pred_check
          _
        $region86: #{mpnn_forward.1} parent=83 // pred_check_branch
          %572 = sbr.rel (%p569) target = $region88
        $region87: #{mpnn_forward.1} parent=83 // pred_region
          %v573 = vld [vmem:[%s0] sm:$0xff]
          %v574 = vld [vmem:[%s0 + $0x8] sm:$0xff]
          %v575 = vld [vmem:[%s5] sm:$0xff]
          %v576 = vld [vmem:[%s6] sm:$0x1]
          %v578 = vlaneseq
          %v579 = vshrl.u32 %v578, 7
          %v580 = vsub.s32 0, %v579
          %v581 = vrot.slane %v576, %v580
          %vm583 = vcmask 64512
          %v585 = vsel %vm583, %v573, 0
          %v588 = vsel %vm583, %v574, 0
          %590 = vmatprep.subr.mxu0 0.0
          %591 = vmatpush1.msra.mxu0 0.0
          %592 = vmatprep.subr.mxu0 0.0
          %593 = vmatpush1.msra.mxu0 0.0
          %594 = vmatprep.subr.mxu0 0.0
          %595 = vmatpush1.msra.mxu0 0.0
          %596 = vmatprep.subr.mxu0 0.0
          %597 = vmatpush1.msra.mxu0 0.0
          %598 = vmatprep.subr.mxu0 0.0
          %599 = vmatpush1.msra.mxu0 0.0
          %600 = vmatprep.subr.mxu0 0.0
          %601 = vmatpush1.msra.mxu0 0.0
          %602 = vmatprep.subr.mxu0 0.0
          %603 = vmatpush1.msra.mxu0 0.0
          %604 = vmatprep.subr.mxu0 0.0
          %605 = vmatpush1.msra.mxu0 0.0
          %606 = vmatprep.subr.mxu0 0.0
          %607 = vmatpush1.msra.mxu0 0.0
          %608 = vmatprep.subr.mxu0 0.0
          %609 = vmatpush1.msra.mxu0 0.0
          %610 = vmatprep.subr.mxu0 0.0
          %611 = vmatpush1.msra.mxu0 0.0
          %612 = vmatprep.subr.mxu0 0.0
          %613 = vmatpush1.msra.mxu0 0.0
          %614 = vmatprep.subr.mxu0 0.0
          %615 = vmatpush1.msra.mxu0 0.0
          %616 = vmatprep.subr.mxu0 0.0
          %617 = vmatpush1.msra.mxu0 0.0
          %618 = vmatprep.subr.mxu0 0.0
          %619 = vmatpush1.msra.mxu0 0.0
          %620 = vmatprep.subr.mxu0 0.0
          %621 = vmatpush1.msra.mxu0 %v575
          %622 = vmatprep.subr.mxu0 0.0
          %623 = vmatpush2.msra.mxu0 0.0
          %624 = vmatprep.subr.mxu0 0.0
          %625 = vmatpush2.msra.mxu0 0.0
          %626 = vmatprep.subr.mxu0 0.0
          %627 = vmatpush2.msra.mxu0 0.0
          %628 = vmatprep.subr.mxu0 0.0
          %629 = vmatpush2.msra.mxu0 0.0
          %630 = vmatprep.subr.mxu0 0.0
          %631 = vmatpush2.msra.mxu0 0.0
          %632 = vmatprep.subr.mxu0 0.0
          %633 = vmatpush2.msra.mxu0 0.0
          %634 = vmatprep.subr.mxu0 0.0
          %635 = vmatpush2.msra.mxu0 0.0
          %636 = vmatprep.subr.mxu0 0.0
          %637 = vmatpush2.msra.mxu0 0.0
          %638 = vmatprep.subr.mxu0 0.0
          %639 = vmatpush2.msra.mxu0 0.0
          %640 = vmatprep.subr.mxu0 0.0
          %641 = vmatpush2.msra.mxu0 0.0
          %642 = vmatprep.subr.mxu0 0.0
          %643 = vmatpush2.msra.mxu0 0.0
          %644 = vmatprep.subr.mxu0 0.0
          %645 = vmatpush2.msra.mxu0 0.0
          %646 = vmatprep.subr.mxu0 0.0
          %647 = vmatpush2.msra.mxu0 0.0
          %648 = vmatprep.subr.mxu0 0.0
          %649 = vmatpush2.msra.mxu0 0.0
          %650 = vmatprep.subr.mxu0 0.0
          %651 = vmatpush2.msra.mxu0 0.0
          %652 = vmatprep.subr.mxu0 0.0
          %653 = vmatpush2.msra.mxu0 0.0
          %654 = vmatprep.mubr.f32.mxu0 0.0
          %655 = vmatmul.mubr.f32.gmra.mxu0 %v585
          %v656 = vpop.f32.mrf.mxu0
          %v657 = vadd.f32 %v581, %v656
          %v658 = vpop.f32.mrf.mxu0
          %659 = vmatprep.mubr.f32.mxu0 0.0
          %660 = vmatmul.mubr.f32.gmra.mxu0 %v588
          %v661 = vpop.f32.mrf.mxu0
          %v662 = vadd.f32 %v581, %v661
          %v663 = vpop.f32.mrf.mxu0
          %664 = vdwg.mxu0
          %v665 = vmax.f32 %v657, 0.0
          %v666 = vmax.f32 %v662, 0.0
          %vm667 = vcmask 261120
          %668 = vst.msk [vmem:[#allocation2] sm:$0xff] %vm667, %v665
          %669 = vst.msk [vmem:[#allocation2 + $0x8] sm:$0xff] %vm667, %v666
          %670 = vst.msk [vmem:[#allocation3] sm:$0xff] %vm667, %v665
          %671 = vst.msk [vmem:[#allocation3 + $0x8] sm:$0xff] %vm667, %v666
          %v672 = vpack.c.bf16 %v666, %v665
          %v674 = vunpack.c.l.b16 %v672
          %v675 = vunpack.c.h.b16 %v672
          %v676 = vpack.c.b16 %v674, %v674
          %v677 = vpack.c.b16 %v675, %v675
          %vm680 = vcmask 257024
          %681 = vst.msk [vmem:[#allocation4] sm:$0xf] %vm680, %v676
          %682 = vst.msk [vmem:[#allocation4 + $0x4] sm:$0xf] %vm680, %v677
        $region88: #{mpnn_forward.1} parent=83 // pred_fallthru
          _
        // Predicated region
        $region89: #{mpnn_forward.1} parent=83 // pred_check
          %p683 = pneg %p568
        $region90: #{mpnn_forward.1} parent=83 // pred_check_branch
          %685 = sbr.rel (%p683) target = $region92
        $region91: #{mpnn_forward.1} parent=83 // pred_region
          %vm686 = vcmask 261120
          %687 = vst.msk [vmem:[#allocation5] sm:$0xff] %vm686, 0.0
          %688 = vst.msk [vmem:[#allocation5 + $0x8] sm:$0xff] %vm686, 0.0
        $region92: #{mpnn_forward.1} parent=83 // pred_fallthru
          _
        %v689 = vld [vmem:[%s560] sm:$0xf]
        %v690 = vld [vmem:[%s560 + $0x4] sm:$0xf]
        %v691 = vld [vmem:[%s560 + $0x8] sm:$0xf]
        %v692 = vld [vmem:[%s560 + $0xc] sm:$0xf]
        %v693 = vld [vmem:[#allocation4] sm:$0xf]
        %v694 = vld [vmem:[#allocation4 + $0x4] sm:$0xf]
        %v699 = vunpack.c.l.b16 %v689
        %v700 = vunpack.c.l.b16 %v690
        %v701 = vunpack.c.l.b16 %v691
        %v702 = vunpack.c.l.b16 %v692
        %v703 = vpack.c.b16 %v700, %v699
        %v704 = vpack.c.b16 %v702, %v701
        %v707 = vunpack.c.l.b16 %v693
        %v708 = vunpack.c.l.b16 %v694
        %v709 = vpack.c.b16 %v708, %v707
        %vm711 = vcmask 130048
        %v713 = vsel %vm711, %v703, 0
        %v716 = vsel %vm711, %v704, 0
        %718 = vmatprep.subr.bf16.mxu0 0
        %719 = vmatpush1.bf16.msra.mxu0 0
        %720 = vmatprep.subr.bf16.mxu0 0
        %721 = vmatpush1.bf16.msra.mxu0 0
        %722 = vmatprep.subr.bf16.mxu0 0
        %723 = vmatpush1.bf16.msra.mxu0 0
        %724 = vmatprep.subr.bf16.mxu0 0
        %725 = vmatpush1.bf16.msra.mxu0 0
        %726 = vmatprep.subr.bf16.mxu0 0
        %727 = vmatpush1.bf16.msra.mxu0 0
        %728 = vmatprep.subr.bf16.mxu0 0
        %729 = vmatpush1.bf16.msra.mxu0 0
        %730 = vmatprep.subr.bf16.mxu0 0
        %731 = vmatpush1.bf16.msra.mxu0 0
        %732 = vmatprep.subr.bf16.mxu0 0
        %733 = vmatpush1.bf16.msra.mxu0 %v709
        %734 = vmatprep.subr.bf16.mxu0 0
        %735 = vmatpush2.bf16.msra.mxu0 0
        %736 = vmatprep.subr.bf16.mxu0 0
        %737 = vmatpush2.bf16.msra.mxu0 0
        %738 = vmatprep.subr.bf16.mxu0 0
        %739 = vmatpush2.bf16.msra.mxu0 0
        %740 = vmatprep.subr.bf16.mxu0 0
        %741 = vmatpush2.bf16.msra.mxu0 0
        %742 = vmatprep.subr.bf16.mxu0 0
        %743 = vmatpush2.bf16.msra.mxu0 0
        %744 = vmatprep.subr.bf16.mxu0 0
        %745 = vmatpush2.bf16.msra.mxu0 0
        %746 = vmatprep.subr.bf16.mxu0 0
        %747 = vmatpush2.bf16.msra.mxu0 0
        %748 = vmatprep.subr.bf16.mxu0 0
        %749 = vmatpush2.bf16.msra.mxu0 0
        %750 = vmatprep.mubr.bf16.mxu0 0
        %751 = vmatmul.mubr.bf16.gmra.mxu0 %v713
        %v752 = vpop.f32.mrf.mxu0
        %v753 = vadd.f32 0.0, %v752
        %v754 = vpop.f32.mrf.mxu0
        %v755 = vpop.f32.mrf.mxu0
        %v756 = vadd.f32 0.0, %v755
        %v757 = vpop.f32.mrf.mxu0
        %758 = vmatprep.mubr.bf16.mxu0 0
        %759 = vmatmul.mubr.bf16.gmra.mxu0 %v716
        %v760 = vpop.f32.mrf.mxu0
        %v761 = vadd.f32 0.0, %v760
        %v762 = vpop.f32.mrf.mxu0
        %v763 = vpop.f32.mrf.mxu0
        %v764 = vadd.f32 0.0, %v763
        %v765 = vpop.f32.mrf.mxu0
        %766 = vdwg.mxu0
        %v767 = vpack.c.bf16 %v756, %v753
        %v768 = vpack.c.bf16 %v764, %v761
        %771 = vrot.lane.b32.xlu0 %v767, 32
        %v772 = vpop.permute.xlu0 %771
        %773 = vrot.lane.b32.xlu0 %v768, 32
        %v774 = vpop.permute.xlu0 %773
        %775 = vrot.lane.b32.xlu0 %v767, 64
        %v776 = vpop.permute.xlu0 %775
        %777 = vrot.lane.b32.xlu0 %v768, 64
        %v778 = vpop.permute.xlu0 %777
        %779 = vrot.lane.b32.xlu0 %v767, 96
        %v780 = vpop.permute.xlu0 %779
        %781 = vrot.lane.b32.xlu0 %v768, 96
        %v782 = vpop.permute.xlu0 %781
        %vm783 = vcmask 261120
        %v786 = vsel %vm783, %v767, %v772
        %v789 = vsel %vm783, %v768, %v774
        %vm790 = vcmask 523264
        %v792 = vsel %vm790, %v786, %v776
        %v794 = vsel %vm790, %v789, %v778
        %vm795 = vcmask 785408
        %v797 = vsel %vm795, %v792, %v780
        %v800 = vsel %vm795, %v794, %v782
        %v802 = vld [vmem:[%s554] sm:$0xff]
        %v803 = vld [vmem:[%s554 + $0x8] sm:$0xff]
        %v804 = vld [vmem:[%s554 + $0x10] sm:$0xff]
        %v805 = vld [vmem:[%s554 + $0x18] sm:$0xff]
        %v810 = vunpack.c.l.b16 %v802
        %v811 = vunpack.c.h.b16 %v802
        %v812 = vunpack.c.l.b16 %v803
        %v813 = vunpack.c.h.b16 %v803
        %v814 = vunpack.c.l.b16 %v804
        %v815 = vunpack.c.h.b16 %v804
        %v816 = vunpack.c.l.b16 %v805
        %v817 = vunpack.c.h.b16 %v805
        %v818 = vpack.c.b16 %v812, %v810
        %v819 = vpack.c.b16 %v813, %v811
        %v820 = vpack.c.b16 %v816, %v814
        %v821 = vpack.c.b16 %v817, %v815
        %v826 = vmul.bf16 %v797, %v818
        %v827 = vmul.bf16 %v767, %v819
        %v828 = vmul.bf16 %v800, %v820
        %v829 = vmul.bf16 %v768, %v821
        %v830 = vld [vmem:[%s7] sm:$0xf]
        %v831 = vld [vmem:[%s7 + $0x4] sm:$0xf]
        %v832 = vld [vmem:[%s7 + $0x8] sm:$0xf]
        %v833 = vld [vmem:[%s7 + $0xc] sm:$0xf]
        %v834 = vld [vmem:[%s7 + $0x10] sm:$0xf]
        %v835 = vld [vmem:[%s7 + $0x14] sm:$0xf]
        %v836 = vld [vmem:[%s7 + $0x18] sm:$0xf]
        %v837 = vld [vmem:[%s7 + $0x1c] sm:$0xf]
        %v838 = vld [vmem:[%s7 + $0x20] sm:$0xf]
        %v839 = vld [vmem:[%s7 + $0x24] sm:$0xf]
        %v840 = vld [vmem:[%s7 + $0x28] sm:$0xf]
        %v841 = vld [vmem:[%s7 + $0x2c] sm:$0xf]
        %v842 = vld [vmem:[%s7 + $0x30] sm:$0xf]
        %v843 = vld [vmem:[%s7 + $0x34] sm:$0xf]
        %v844 = vld [vmem:[%s7 + $0x38] sm:$0xf]
        %v845 = vld [vmem:[%s7 + $0x3c] sm:$0xf]
        %v846 = vld [vmem:[%s7 + $0x40] sm:$0xf]
        %v847 = vld [vmem:[%s7 + $0x44] sm:$0xf]
        %v848 = vld [vmem:[%s7 + $0x48] sm:$0xf]
        %v849 = vld [vmem:[%s7 + $0x4c] sm:$0xf]
        %v870 = vunpack.c.l.b16 %v830
        %v871 = vunpack.c.l.b16 %v831
        %v872 = vunpack.c.l.b16 %v832
        %v873 = vunpack.c.l.b16 %v833
        %v874 = vunpack.c.l.b16 %v834
        %v875 = vunpack.c.l.b16 %v835
        %v876 = vunpack.c.l.b16 %v836
        %v877 = vunpack.c.l.b16 %v837
        %v878 = vunpack.c.l.b16 %v838
        %v879 = vunpack.c.l.b16 %v839
        %v880 = vunpack.c.l.b16 %v840
        %v881 = vunpack.c.l.b16 %v841
        %v882 = vunpack.c.l.b16 %v842
        %v883 = vunpack.c.l.b16 %v843
        %v884 = vunpack.c.l.b16 %v844
        %v885 = vunpack.c.l.b16 %v845
        %v886 = vunpack.c.l.b16 %v846
        %v887 = vunpack.c.l.b16 %v847
        %v888 = vunpack.c.l.b16 %v848
        %v889 = vunpack.c.l.b16 %v849
        %v890 = vpack.c.b16 %v871, %v870
        %v891 = vpack.c.b16 %v873, %v872
        %v892 = vpack.c.b16 %v875, %v874
        %v893 = vpack.c.b16 %v877, %v876
        %v894 = vpack.c.b16 %v879, %v878
        %v895 = vpack.c.b16 %v881, %v880
        %v896 = vpack.c.b16 %v883, %v882
        %v897 = vpack.c.b16 %v885, %v884
        %v898 = vpack.c.b16 %v887, %v886
        %v899 = vpack.c.b16 %v889, %v888
        %v911 = vsel %vm783, %v827, 0
        %v914 = vsel %vm783, %v829, 0
        %916 = vmatprep.subr.bf16.mxu0 0
        %917 = vmatpush1.bf16.msra.mxu0 %v897
        %918 = vmatprep.subr.bf16.mxu0 0
        %919 = vmatpush1.bf16.msra.mxu0 %v896
        %920 = vmatprep.subr.bf16.mxu0 0
        %921 = vmatpush1.bf16.msra.mxu0 %v895
        %922 = vmatprep.subr.bf16.mxu0 0
        %923 = vmatpush1.bf16.msra.mxu0 %v894
        %924 = vmatprep.subr.bf16.mxu0 0
        %925 = vmatpush1.bf16.msra.mxu0 %v893
        %926 = vmatprep.subr.bf16.mxu0 0
        %927 = vmatpush1.bf16.msra.mxu0 %v892
        %928 = vmatprep.subr.bf16.mxu0 0
        %929 = vmatpush1.bf16.msra.mxu0 %v891
        %930 = vmatprep.subr.bf16.mxu0 0
        %931 = vmatpush1.bf16.msra.mxu0 %v890
        %932 = vmatprep.subr.bf16.mxu0 0
        %933 = vmatpush2.bf16.msra.mxu0 0
        %934 = vmatprep.subr.bf16.mxu0 0
        %935 = vmatpush2.bf16.msra.mxu0 0
        %936 = vmatprep.subr.bf16.mxu0 0
        %937 = vmatpush2.bf16.msra.mxu0 0
        %938 = vmatprep.subr.bf16.mxu0 0
        %939 = vmatpush2.bf16.msra.mxu0 0
        %940 = vmatprep.subr.bf16.mxu0 0
        %941 = vmatpush2.bf16.msra.mxu0 0
        %942 = vmatprep.subr.bf16.mxu0 0
        %943 = vmatpush2.bf16.msra.mxu0 0
        %944 = vmatprep.subr.bf16.mxu0 0
        %945 = vmatpush2.bf16.msra.mxu0 %v899
        %946 = vmatprep.subr.bf16.mxu0 0
        %947 = vmatpush2.bf16.msra.mxu0 %v898
        %948 = vmatprep.mubr.bf16.mxu0 %v911
        %949 = vmatmul.mubr.bf16.gmra.mxu0 %v826
        %v950 = vpop.f32.mrf.mxu0
        %v951 = vadd.f32 0.0, %v950
        %v952 = vpop.f32.mrf.mxu0
        %v953 = vpop.f32.mrf.mxu0
        %v954 = vadd.f32 0.0, %v953
        %v955 = vpop.f32.mrf.mxu0
        %956 = vmatprep.mubr.bf16.mxu0 %v914
        %957 = vmatmul.mubr.bf16.gmra.mxu0 %v828
        %v958 = vpop.f32.mrf.mxu0
        %v959 = vadd.f32 0.0, %v958
        %v960 = vpop.f32.mrf.mxu0
        %v961 = vpop.f32.mrf.mxu0
        %v962 = vadd.f32 0.0, %v961
        %v963 = vpop.f32.mrf.mxu0
        %964 = vdwg.mxu0
        %v965 = vld [vmem:[#allocation5] sm:$0xff]
        %v966 = vld [vmem:[#allocation5 + $0x8] sm:$0xff]
        %v967 = vld [vmem:[%s565] sm:$0xf]
        %v968 = vld [vmem:[%s565 + $0x4] sm:$0xf]
        %v969 = vpack.c.bf16 %v954, %v951
        %v970 = vpack.c.bf16 %v962, %v959
        %v973 = vunpack.c.l.b16 %v967
        %v974 = vunpack.c.l.b16 %v968
        %v975 = vpack.c.b16 %v974, %v973
        %v977 = vsel %vm783, %v975, 0
        %979 = vmatprep.subr.bf16.mxu0 0
        %980 = vmatpush1.bf16.msra.mxu0 0
        %981 = vmatprep.subr.bf16.mxu0 0
        %982 = vmatpush1.bf16.msra.mxu0 0
        %983 = vmatprep.subr.bf16.mxu0 0
        %984 = vmatpush1.bf16.msra.mxu0 0
        %985 = vmatprep.subr.bf16.mxu0 0
        %986 = vmatpush1.bf16.msra.mxu0 0
        %987 = vmatprep.subr.bf16.mxu0 0
        %988 = vmatpush1.bf16.msra.mxu0 0
        %989 = vmatprep.subr.bf16.mxu0 0
        %990 = vmatpush1.bf16.msra.mxu0 0
        %991 = vmatprep.subr.bf16.mxu0 0
        %992 = vmatpush1.bf16.msra.mxu0 %v970
        %993 = vmatprep.subr.bf16.mxu0 0
        %994 = vmatpush1.bf16.msra.mxu0 %v969
        %995 = vmatprep.subr.bf16.mxu0 0
        %996 = vmatpush2.bf16.msra.mxu0 0
        %997 = vmatprep.subr.bf16.mxu0 0
        %998 = vmatpush2.bf16.msra.mxu0 0
        %999 = vmatprep.subr.bf16.mxu0 0
        %1000 = vmatpush2.bf16.msra.mxu0 0
        %1001 = vmatprep.subr.bf16.mxu0 0
        %1002 = vmatpush2.bf16.msra.mxu0 0
        %1003 = vmatprep.subr.bf16.mxu0 0
        %1004 = vmatpush2.bf16.msra.mxu0 0
        %1005 = vmatprep.subr.bf16.mxu0 0
        %1006 = vmatpush2.bf16.msra.mxu0 0
        %1007 = vmatprep.subr.bf16.mxu0 0
        %1008 = vmatpush2.bf16.msra.mxu0 0
        %1009 = vmatprep.subr.bf16.mxu0 0
        %1010 = vmatpush2.bf16.msra.mxu0 0
        %1011 = vmatprep.mubr.bf16.mxu0 0
        %1012 = vmatmul.mubr.bf16.gmra.mxu0 %v977
        %v1013 = vpop.f32.mrf.mxu0
        %v1014 = vadd.f32 0.0, %v1013
        %v1015 = vpop.f32.mrf.mxu0
        %v1016 = vpop.f32.mrf.mxu0
        %v1017 = vadd.f32 0.0, %v1016
        %v1018 = vpop.f32.mrf.mxu0
        %1019 = vdwg.mxu0
        %v1020 = vadd.f32 %v965, %v1014
        %v1021 = vadd.f32 %v966, %v1017
        %1022 = vst.msk [vmem:[#allocation5] sm:$0xff] %vm783, %v1020
        %1023 = vst.msk [vmem:[#allocation5 + $0x8] sm:$0xff] %vm783, %v1021
        // Predicated region
        $region93: #{mpnn_forward.1} parent=83 // pred_check
          %p1024 = pneg %p568
        $region94: #{mpnn_forward.1} parent=83 // pred_check_branch
          %1026 = sbr.rel (%p1024) target = $region96
        $region95: #{mpnn_forward.1} parent=83 // pred_region
          %v1027 = vld [vmem:[#allocation5] sm:$0xff]
          %v1028 = vld [vmem:[#allocation5 + $0x8] sm:$0xff]
          %v1029 = vld [vmem:[%s8] sm:$0x1]
          %v1031 = vlaneseq
          %v1032 = vshrl.u32 %v1031, 7
          %v1033 = vsub.s32 0, %v1032
          %v1034 = vrot.slane %v1029, %v1033
          %v1036 = vadd.f32 %v1027, %v1034
          %v1037 = vadd.f32 %v1028, %v1034
          %v1038 = vmax.f32 %v1036, 0.0
          %v1039 = vmax.f32 %v1037, 0.0
          %v1040 = vld [vmem:[#allocation3] sm:$0xff]
          %v1041 = vld [vmem:[#allocation3 + $0x8] sm:$0xff]
          %1044 = vrot.lane.b32.xlu0 %v1040, 32
          %v1045 = vpop.permute.xlu0 %1044
          %1046 = vrot.lane.b32.xlu0 %v1041, 32
          %v1047 = vpop.permute.xlu0 %1046
          %v1050 = vsel %vm783, %v1038, %v1045
          %v1051 = vsel %vm783, %v1039, %v1047
          %v1052 = vld [vmem:[%s9] sm:$0xff]
          %v1053 = vld [vmem:[%s9 + $0x8] sm:$0xff]
          %v1054 = vld [vmem:[%s9 + $0x10] sm:$0xff]
          %v1055 = vld [vmem:[%s9 + $0x18] sm:$0xff]
          %v1056 = vld [vmem:[%s9 + $0x20] sm:$0xff]
          %v1057 = vld [vmem:[%s9 + $0x28] sm:$0xff]
          %v1058 = vld [vmem:[%s9 + $0x30] sm:$0xff]
          %v1059 = vld [vmem:[%s9 + $0x38] sm:$0xff]
          %v1060 = vld [vmem:[%s9 + $0x40] sm:$0xff]
          %v1061 = vld [vmem:[%s9 + $0x48] sm:$0xff]
          %v1062 = vld [vmem:[%s9 + $0x50] sm:$0xff]
          %v1063 = vld [vmem:[%s9 + $0x58] sm:$0xff]
          %v1064 = vld [vmem:[%s9 + $0x60] sm:$0xff]
          %v1065 = vld [vmem:[%s9 + $0x68] sm:$0xff]
          %v1066 = vld [vmem:[%s9 + $0x70] sm:$0xff]
          %v1067 = vld [vmem:[%s9 + $0x78] sm:$0xff]
          %v1068 = vld [vmem:[%s10] sm:$0x3]
          %v1070 = vlaneseq
          %v1071 = vshrl.u32 %v1070, 7
          %v1072 = vsub.s32 0, %v1071
          %v1073 = vrot.slane %v1068, %v1072
          %v1074 = vlaneseq
          %v1075 = vshrl.u32 %v1074, 7
          %v1076 = vsub.s32 1, %v1075
          %v1077 = vrot.slane %v1068, %v1076
          %v1081 = vsel %vm790, %v1050, 0
          %v1084 = vsel %vm790, %v1051, 0
          %1086 = vmatprep.subr.mxu0 0.0
          %1087 = vmatpush1.msra.mxu0 0.0
          %1088 = vmatprep.subr.mxu0 0.0
          %1089 = vmatpush1.msra.mxu0 0.0
          %1090 = vmatprep.subr.mxu0 0.0
          %1091 = vmatpush1.msra.mxu0 0.0
          %1092 = vmatprep.subr.mxu0 0.0
          %1093 = vmatpush1.msra.mxu0 0.0
          %1094 = vmatprep.subr.mxu0 0.0
          %1095 = vmatpush1.msra.mxu0 0.0
          %1096 = vmatprep.subr.mxu0 0.0
          %1097 = vmatpush1.msra.mxu0 0.0
          %1098 = vmatprep.subr.mxu0 0.0
          %1099 = vmatpush1.msra.mxu0 0.0
          %1100 = vmatprep.subr.mxu0 0.0
          %1101 = vmatpush1.msra.mxu0 0.0
          %1102 = vmatprep.subr.mxu0 %v1067
          %1103 = vmatpush1.msra.mxu0 %v1066
          %1104 = vmatprep.subr.mxu0 %v1065
          %1105 = vmatpush1.msra.mxu0 %v1064
          %1106 = vmatprep.subr.mxu0 %v1063
          %1107 = vmatpush1.msra.mxu0 %v1062
          %1108 = vmatprep.subr.mxu0 %v1061
          %1109 = vmatpush1.msra.mxu0 %v1060
          %1110 = vmatprep.subr.mxu0 %v1059
          %1111 = vmatpush1.msra.mxu0 %v1058
          %1112 = vmatprep.subr.mxu0 %v1057
          %1113 = vmatpush1.msra.mxu0 %v1056
          %1114 = vmatprep.subr.mxu0 %v1055
          %1115 = vmatpush1.msra.mxu0 %v1054
          %1116 = vmatprep.subr.mxu0 %v1053
          %1117 = vmatpush1.msra.mxu0 %v1052
          %1118 = vmatprep.subr.mxu0 0.0
          %1119 = vmatpush2.msra.mxu0 0.0
          %1120 = vmatprep.subr.mxu0 0.0
          %1121 = vmatpush2.msra.mxu0 0.0
          %1122 = vmatprep.subr.mxu0 0.0
          %1123 = vmatpush2.msra.mxu0 0.0
          %1124 = vmatprep.subr.mxu0 0.0
          %1125 = vmatpush2.msra.mxu0 0.0
          %1126 = vmatprep.subr.mxu0 0.0
          %1127 = vmatpush2.msra.mxu0 0.0
          %1128 = vmatprep.subr.mxu0 0.0
          %1129 = vmatpush2.msra.mxu0 0.0
          %1130 = vmatprep.subr.mxu0 0.0
          %1131 = vmatpush2.msra.mxu0 0.0
          %1132 = vmatprep.subr.mxu0 0.0
          %1133 = vmatpush2.msra.mxu0 0.0
          %1134 = vmatprep.subr.mxu0 0.0
          %1135 = vmatpush2.msra.mxu0 0.0
          %1136 = vmatprep.subr.mxu0 0.0
          %1137 = vmatpush2.msra.mxu0 0.0
          %1138 = vmatprep.subr.mxu0 0.0
          %1139 = vmatpush2.msra.mxu0 0.0
          %1140 = vmatprep.subr.mxu0 0.0
          %1141 = vmatpush2.msra.mxu0 0.0
          %1142 = vmatprep.subr.mxu0 0.0
          %1143 = vmatpush2.msra.mxu0 0.0
          %1144 = vmatprep.subr.mxu0 0.0
          %1145 = vmatpush2.msra.mxu0 0.0
          %1146 = vmatprep.subr.mxu0 0.0
          %1147 = vmatpush2.msra.mxu0 0.0
          %1148 = vmatprep.subr.mxu0 0.0
          %1149 = vmatpush2.msra.mxu0 0.0
          %1150 = vmatprep.mubr.f32.mxu0 0.0
          %1151 = vmatmul.mubr.f32.gmra.mxu0 %v1081
          %v1152 = vpop.f32.mrf.mxu0
          %v1153 = vadd.f32 %v1073, %v1152
          %v1154 = vpop.f32.mrf.mxu0
          %v1155 = vadd.f32 %v1077, %v1154
          %1156 = vmatprep.mubr.f32.mxu0 0.0
          %1157 = vmatmul.mubr.f32.gmra.mxu0 %v1084
          %v1158 = vpop.f32.mrf.mxu0
          %v1159 = vadd.f32 %v1073, %v1158
          %v1160 = vpop.f32.mrf.mxu0
          %v1161 = vadd.f32 %v1077, %v1160
          %1162 = vdwg.mxu0
          %1165 = vrot.lane.b32.xlu0 %v1153, 32
          %v1166 = vpop.permute.xlu0 %1165
          %1167 = vrot.lane.b32.xlu0 %v1159, 32
          %v1168 = vpop.permute.xlu0 %1167
          %v1171 = vadd.f32 %v1153, %v1166
          %v1172 = vadd.f32 %v1159, %v1168
          %v1173 = vxor.u32 %v1171, 2147483648
          %v1174 = vxor.u32 %v1172, 2147483648
          %v1175 = vmul.f32 %v1173, 1.442695
          %v1176 = vpow.pop %v1175
          %v1177 = vmul.f32 %v1174, 1.442695
          %v1178 = vpow.pop %v1177
          %v1179 = vadd.f32 %v1176, 1.0
          %v1180 = vadd.f32 %v1178, 1.0
          %v1181 = vrcp.pop %v1179
          %v1182 = vmul.f32 1.0, %v1181
          %v1183 = vrcp.pop %v1180
          %v1184 = vmul.f32 1.0, %v1183
          %1187 = vrot.lane.b32.xlu0 %v1155, 32
          %v1188 = vpop.permute.xlu0 %1187
          %1189 = vrot.lane.b32.xlu0 %v1161, 32
          %v1190 = vpop.permute.xlu0 %1189
          %v1193 = vadd.f32 %v1153, %v1188
          %v1194 = vadd.f32 %v1159, %v1190
          %v1195 = vxor.u32 %v1193, 2147483648
          %v1196 = vxor.u32 %v1194, 2147483648
          %v1197 = vmul.f32 %v1195, 1.442695
          %v1198 = vpow.pop %v1197
          %v1199 = vmul.f32 %v1196, 1.442695
          %v1200 = vpow.pop %v1199
          %v1201 = vadd.f32 %v1198, 1.0
          %v1202 = vadd.f32 %v1200, 1.0
          %v1203 = vrcp.pop %v1201
          %v1204 = vmul.f32 1.0, %v1203
          %v1205 = vrcp.pop %v1202
          %v1206 = vmul.f32 1.0, %v1205
          %1207 = vrot.lane.b32.xlu0 %v1155, 96
          %v1208 = vpop.permute.xlu0 %1207
          %1209 = vrot.lane.b32.xlu0 %v1161, 96
          %v1210 = vpop.permute.xlu0 %1209
          %v1213 = vmul.f32 %v1182, %v1208
          %v1214 = vmul.f32 %v1184, %v1210
          %1217 = vrot.lane.b32.xlu0 %v1213, 64
          %v1218 = vpop.permute.xlu0 %1217
          %1219 = vrot.lane.b32.xlu0 %v1214, 64
          %v1220 = vpop.permute.xlu0 %1219
          %v1223 = vadd.f32 %v1153, %v1218
          %v1224 = vadd.f32 %v1159, %v1220
          %v1225 = vtanh.pop %v1223
          %v1226 = vtanh.pop %v1224
          %v1227 = vsub.f32 1.0, %v1204
          %v1228 = vsub.f32 1.0, %v1206
          %1231 = vrot.lane.b32.xlu0 %v1225, 96
          %v1232 = vpop.permute.xlu0 %1231
          %1233 = vrot.lane.b32.xlu0 %v1226, 96
          %v1234 = vpop.permute.xlu0 %1233
          %v1237 = vmul.f32 %v1227, %v1232
          %v1238 = vmul.f32 %v1228, %v1234
          %v1239 = vmul.f32 %v1204, %v1045
          %v1240 = vmul.f32 %v1206, %v1047
          %v1241 = vadd.f32 %v1237, %v1239
          %v1242 = vadd.f32 %v1238, %v1240
          %1245 = vrot.lane.b32.xlu0 %v1241, 96
          %v1246 = vpop.permute.xlu0 %1245
          %1247 = vrot.lane.b32.xlu0 %v1242, 96
          %v1248 = vpop.permute.xlu0 %1247
          %1251 = vst.msk [vmem:[#allocation3] sm:$0xff] %vm783, %v1246
          %1252 = vst.msk [vmem:[#allocation3 + $0x8] sm:$0xff] %vm783, %v1248
          %v1253 = vpack.c.bf16 %v1242, %v1241
          %v1255 = vunpack.c.l.b16 %v1253
          %v1256 = vunpack.c.h.b16 %v1253
          %v1257 = vpack.c.b16 %v1255, %v1255
          %v1258 = vpack.c.b16 %v1256, %v1256
          %1259 = vrot.lane.b32.xlu0 %v1257, 96
          %v1260 = vpop.permute.xlu0 %1259
          %1261 = vrot.lane.b32.xlu0 %v1258, 96
          %v1262 = vpop.permute.xlu0 %1261
          %vm1265 = vcmask 257024
          %1266 = vst.msk [vmem:[#allocation4] sm:$0xf] %vm1265, %v1260
          %1267 = vst.msk [vmem:[#allocation4 + $0x4] sm:$0xf] %vm1265, %v1262
        $region96: #{mpnn_forward.1} parent=83 // pred_fallthru
          _
        %p1268 = scmp.eq.s32.totalorder %s34, 2
        %p1269 = pnand %p1268, %p568
        %p1270 = pneg %p1269
        // Predicated region
        $region97: #{mpnn_forward.1} parent=83 // pred_check
          _
        $region98: #{mpnn_forward.1} parent=83 // pred_check_branch
          %1272 = sbr.rel (%p1269) target = $region100
        $region99: #{mpnn_forward.1} parent=83 // pred_region
          %v1273 = vld [vmem:[#allocation2] sm:$0xff]
          %v1274 = vld [vmem:[#allocation2 + $0x8] sm:$0xff]
          %v1275 = vld [vmem:[#allocation3] sm:$0xff]
          %v1276 = vld [vmem:[#allocation3 + $0x8] sm:$0xff]
          %1279 = vrot.lane.b32.xlu0 %v1275, 32
          %v1280 = vpop.permute.xlu0 %1279
          %1281 = vrot.lane.b32.xlu0 %v1276, 32
          %v1282 = vpop.permute.xlu0 %1281
          %v1285 = vsel %vm783, %v1273, %v1280
          %v1286 = vsel %vm783, %v1274, %v1282
          %v1287 = vld [vmem:[%s4] sm:$0x3]
          %vm1288 = vcmp.gt.f32.partialorder %v1287, 0.5
          %v1289 = vld [vmem:[%s11] sm:$0xff]
          %v1290 = vld [vmem:[%s11 + $0x8] sm:$0xff]
          %v1291 = vld [vmem:[%s11 + $0x10] sm:$0xff]
          %v1292 = vld [vmem:[%s11 + $0x18] sm:$0xff]
          %v1293 = vld [vmem:[%s11 + $0x20] sm:$0xff]
          %v1294 = vld [vmem:[%s11 + $0x28] sm:$0xff]
          %v1295 = vld [vmem:[%s11 + $0x30] sm:$0xff]
          %v1296 = vld [vmem:[%s11 + $0x38] sm:$0xff]
          %v1297 = vld [vmem:[%s11 + $0x40] sm:$0xff]
          %v1298 = vld [vmem:[%s11 + $0x48] sm:$0xff]
          %v1299 = vld [vmem:[%s11 + $0x50] sm:$0xff]
          %v1300 = vld [vmem:[%s11 + $0x58] sm:$0xff]
          %v1301 = vld [vmem:[%s11 + $0x60] sm:$0xff]
          %v1302 = vld [vmem:[%s11 + $0x68] sm:$0xff]
          %v1303 = vld [vmem:[%s11 + $0x70] sm:$0xff]
          %v1304 = vld [vmem:[%s11 + $0x78] sm:$0xff]
          %v1305 = vld [vmem:[%s11 + $0x80] sm:$0xff]
          %v1306 = vld [vmem:[%s11 + $0x88] sm:$0xff]
          %v1307 = vld [vmem:[%s11 + $0x90] sm:$0xff]
          %v1308 = vld [vmem:[%s11 + $0x98] sm:$0xff]
          %v1309 = vld [vmem:[%s11 + $0xa0] sm:$0xff]
          %v1310 = vld [vmem:[%s11 + $0xa8] sm:$0xff]
          %v1311 = vld [vmem:[%s11 + $0xb0] sm:$0xff]
          %v1312 = vld [vmem:[%s11 + $0xb8] sm:$0xff]
          %v1313 = vld [vmem:[%s11 + $0xc0] sm:$0xff]
          %v1314 = vld [vmem:[%s11 + $0xc8] sm:$0xff]
          %v1315 = vld [vmem:[%s11 + $0xd0] sm:$0xff]
          %v1316 = vld [vmem:[%s11 + $0xd8] sm:$0xff]
          %v1317 = vld [vmem:[%s11 + $0xe0] sm:$0xff]
          %v1318 = vld [vmem:[%s11 + $0xe8] sm:$0xff]
          %v1319 = vld [vmem:[%s11 + $0xf0] sm:$0xff]
          %v1320 = vld [vmem:[%s11 + $0xf8] sm:$0xff]
          %v1321 = vld [vmem:[%s11 + $0x100] sm:$0xff]
          %v1322 = vld [vmem:[%s11 + $0x108] sm:$0xff]
          %v1323 = vld [vmem:[%s11 + $0x110] sm:$0xff]
          %v1324 = vld [vmem:[%s11 + $0x118] sm:$0xff]
          %v1325 = vld [vmem:[%s11 + $0x120] sm:$0xff]
          %v1326 = vld [vmem:[%s11 + $0x128] sm:$0xff]
          %v1327 = vld [vmem:[%s11 + $0x130] sm:$0xff]
          %v1328 = vld [vmem:[%s11 + $0x138] sm:$0xff]
          %v1329 = vld [vmem:[%s11 + $0x140] sm:$0xff]
          %v1330 = vld [vmem:[%s11 + $0x148] sm:$0xff]
          %v1331 = vld [vmem:[%s11 + $0x150] sm:$0xff]
          %v1332 = vld [vmem:[%s11 + $0x158] sm:$0xff]
          %v1333 = vld [vmem:[%s11 + $0x160] sm:$0xff]
          %v1334 = vld [vmem:[%s11 + $0x168] sm:$0xff]
          %v1335 = vld [vmem:[%s11 + $0x170] sm:$0xff]
          %v1336 = vld [vmem:[%s11 + $0x178] sm:$0xff]
          %v1337 = vld [vmem:[%s12] sm:$0x3]
          %v1339 = vlaneseq
          %v1340 = vshrl.u32 %v1339, 7
          %v1341 = vsub.s32 0, %v1340
          %v1342 = vrot.slane %v1337, %v1341
          %v1343 = vlaneseq
          %v1344 = vshrl.u32 %v1343, 7
          %v1345 = vsub.s32 1, %v1344
          %v1346 = vrot.slane %v1337, %v1345
          %v1350 = vsel %vm790, 0.0, 0
          %1352 = vmatprep.subr.mxu0 %v1320
          %1353 = vmatpush1.msra.mxu0 %v1319
          %1354 = vmatprep.subr.mxu0 %v1318
          %1355 = vmatpush1.msra.mxu0 %v1317
          %1356 = vmatprep.subr.mxu0 %v1316
          %1357 = vmatpush1.msra.mxu0 %v1315
          %1358 = vmatprep.subr.mxu0 %v1314
          %1359 = vmatpush1.msra.mxu0 %v1313
          %1360 = vmatprep.subr.mxu0 %v1312
          %1361 = vmatpush1.msra.mxu0 %v1311
          %1362 = vmatprep.subr.mxu0 %v1310
          %1363 = vmatpush1.msra.mxu0 %v1309
          %1364 = vmatprep.subr.mxu0 %v1308
          %1365 = vmatpush1.msra.mxu0 %v1307
          %1366 = vmatprep.subr.mxu0 %v1306
          %1367 = vmatpush1.msra.mxu0 %v1305
          %1368 = vmatprep.subr.mxu0 %v1304
          %1369 = vmatpush1.msra.mxu0 %v1303
          %1370 = vmatprep.subr.mxu0 %v1302
          %1371 = vmatpush1.msra.mxu0 %v1301
          %1372 = vmatprep.subr.mxu0 %v1300
          %1373 = vmatpush1.msra.mxu0 %v1299
          %1374 = vmatprep.subr.mxu0 %v1298
          %1375 = vmatpush1.msra.mxu0 %v1297
          %1376 = vmatprep.subr.mxu0 %v1296
          %1377 = vmatpush1.msra.mxu0 %v1295
          %1378 = vmatprep.subr.mxu0 %v1294
          %1379 = vmatpush1.msra.mxu0 %v1293
          %1380 = vmatprep.subr.mxu0 %v1292
          %1381 = vmatpush1.msra.mxu0 %v1291
          %1382 = vmatprep.subr.mxu0 %v1290
          %1383 = vmatpush1.msra.mxu0 %v1289
          %1384 = vmatprep.subr.mxu0 0.0
          %1385 = vmatpush2.msra.mxu0 0.0
          %1386 = vmatprep.subr.mxu0 0.0
          %1387 = vmatpush2.msra.mxu0 0.0
          %1388 = vmatprep.subr.mxu0 0.0
          %1389 = vmatpush2.msra.mxu0 0.0
          %1390 = vmatprep.subr.mxu0 0.0
          %1391 = vmatpush2.msra.mxu0 0.0
          %1392 = vmatprep.subr.mxu0 0.0
          %1393 = vmatpush2.msra.mxu0 0.0
          %1394 = vmatprep.subr.mxu0 0.0
          %1395 = vmatpush2.msra.mxu0 0.0
          %1396 = vmatprep.subr.mxu0 0.0
          %1397 = vmatpush2.msra.mxu0 0.0
          %1398 = vmatprep.subr.mxu0 0.0
          %1399 = vmatpush2.msra.mxu0 0.0
          %1400 = vmatprep.subr.mxu0 %v1336
          %1401 = vmatpush2.msra.mxu0 %v1335
          %1402 = vmatprep.subr.mxu0 %v1334
          %1403 = vmatpush2.msra.mxu0 %v1333
          %1404 = vmatprep.subr.mxu0 %v1332
          %1405 = vmatpush2.msra.mxu0 %v1331
          %1406 = vmatprep.subr.mxu0 %v1330
          %1407 = vmatpush2.msra.mxu0 %v1329
          %1408 = vmatprep.subr.mxu0 %v1328
          %1409 = vmatpush2.msra.mxu0 %v1327
          %1410 = vmatprep.subr.mxu0 %v1326
          %1411 = vmatpush2.msra.mxu0 %v1325
          %1412 = vmatprep.subr.mxu0 %v1324
          %1413 = vmatpush2.msra.mxu0 %v1323
          %1414 = vmatprep.subr.mxu0 %v1322
          %1415 = vmatpush2.msra.mxu0 %v1321
          %1416 = vmatprep.mubr.f32.mxu0 %v1350
          %1417 = vmatmul.mubr.f32.gmra.mxu0 0.0
          %v1418 = vpop.f32.mrf.mxu0
          %v1419 = vadd.f32 %v1342, %v1418
          %v1420 = vpop.f32.mrf.mxu0
          %v1421 = vadd.f32 %v1346, %v1420
          %1422 = vdwg.mxu0
          %v1423 = vxor.u32 %v1419, 2147483648
          %v1424 = vmul.f32 %v1423, 1.442695
          %v1425 = vpow.pop %v1424
          %v1426 = vadd.f32 %v1425, 1.0
          %v1427 = vrcp.pop %v1426
          %v1428 = vmul.f32 1.0, %v1427
          %v1429 = vtanh.pop %v1421
          %v1430 = vxor.u32 %v1421, 2147483648
          %v1431 = vmul.f32 %v1430, 1.442695
          %v1432 = vpow.pop %v1431
          %v1433 = vadd.f32 %v1432, 1.0
          %v1434 = vrcp.pop %v1433
          %v1435 = vmul.f32 1.0, %v1434
          %v1436 = vmul.f32 %v1428, 0.0
          %v1437 = vmul.f32 %v1428, %v1429
          %1439 = vrot.lane.b32.xlu0 %v1437, 64
          %v1440 = vpop.permute.xlu0 %1439
          %v1442 = vadd.f32 %v1436, %v1440
          %v1443 = vtanh.pop %v1442
          %v1444 = vmul.f32 %v1435, %v1443
          %1446 = vrot.lane.b32.xlu0 %v1444, 64
          %v1447 = vpop.permute.xlu0 %1446
          %v1448 = vsel %vm790, %v1447, 0
          %v1451 = vsel %vm790, %v1285, 0
          %v1454 = vsel %vm790, %v1286, 0
          %1456 = vmatprep.subr.mxu0 0.0
          %1457 = vmatpush1.xpose.msra.mxu0 0.0
          %1458 = vmatprep.subr.mxu0 0.0
          %1459 = vmatpush1.xpose.msra.mxu0 0.0
          %1460 = vmatprep.subr.mxu0 0.0
          %1461 = vmatpush1.xpose.msra.mxu0 0.0
          %1462 = vmatprep.subr.mxu0 0.0
          %1463 = vmatpush1.xpose.msra.mxu0 0.0
          %1464 = vmatprep.subr.mxu0 0.0
          %1465 = vmatpush1.xpose.msra.mxu0 0.0
          %1466 = vmatprep.subr.mxu0 0.0
          %1467 = vmatpush1.xpose.msra.mxu0 0.0
          %1468 = vmatprep.subr.mxu0 0.0
          %1469 = vmatpush1.xpose.msra.mxu0 0.0
          %1470 = vmatprep.subr.mxu0 0.0
          %1471 = vmatpush1.xpose.msra.mxu0 0.0
          %1472 = vmatprep.subr.mxu0 0.0
          %1473 = vmatpush1.xpose.msra.mxu0 0.0
          %1474 = vmatprep.subr.mxu0 0.0
          %1475 = vmatpush1.xpose.msra.mxu0 0.0
          %1476 = vmatprep.subr.mxu0 0.0
          %1477 = vmatpush1.xpose.msra.mxu0 0.0
          %1478 = vmatprep.subr.mxu0 0.0
          %1479 = vmatpush1.xpose.msra.mxu0 0.0
          %1480 = vmatprep.subr.mxu0 0.0
          %1481 = vmatpush1.xpose.msra.mxu0 0.0
          %1482 = vmatprep.subr.mxu0 0.0
          %1483 = vmatpush1.xpose.msra.mxu0 0.0
          %1484 = vmatprep.subr.mxu0 0.0
          %1485 = vmatpush1.xpose.msra.mxu0 %v1454
          %1486 = vmatprep.subr.mxu0 0.0
          %1487 = vmatpush1.xpose.msra.mxu0 %v1451
          %1488 = vmatprep.subr.mxu0 0.0
          %1489 = vmatpush2.xpose.msra.mxu0 0.0
          %1490 = vmatprep.subr.mxu0 0.0
          %1491 = vmatpush2.xpose.msra.mxu0 0.0
          %1492 = vmatprep.subr.mxu0 0.0
          %1493 = vmatpush2.xpose.msra.mxu0 0.0
          %1494 = vmatprep.subr.mxu0 0.0
          %1495 = vmatpush2.xpose.msra.mxu0 0.0
          %1496 = vmatprep.subr.mxu0 0.0
          %1497 = vmatpush2.xpose.msra.mxu0 0.0
          %1498 = vmatprep.subr.mxu0 0.0
          %1499 = vmatpush2.xpose.msra.mxu0 0.0
          %1500 = vmatprep.subr.mxu0 0.0
          %1501 = vmatpush2.xpose.msra.mxu0 0.0
          %1502 = vmatprep.subr.mxu0 0.0
          %1503 = vmatpush2.xpose.msra.mxu0 0.0
          %1504 = vmatprep.subr.mxu0 0.0
          %1505 = vmatpush2.xpose.msra.mxu0 0.0
          %1506 = vmatprep.subr.mxu0 0.0
          %1507 = vmatpush2.xpose.msra.mxu0 0.0
          %1508 = vmatprep.subr.mxu0 0.0
          %1509 = vmatpush2.xpose.msra.mxu0 0.0
          %1510 = vmatprep.subr.mxu0 0.0
          %1511 = vmatpush2.xpose.msra.mxu0 0.0
          %1512 = vmatprep.subr.mxu0 0.0
          %1513 = vmatpush2.xpose.msra.mxu0 0.0
          %1514 = vmatprep.subr.mxu0 0.0
          %1515 = vmatpush2.xpose.msra.mxu0 0.0
          %1516 = vmatprep.subr.mxu0 0.0
          %1517 = vmatpush2.xpose.msra.mxu0 0.0
          %1518 = vmatprep.subr.mxu0 0.0
          %1519 = vmatpush2.xpose.msra.mxu0 0.0
          %1520 = vmatprep.mubr.f32.mxu0 0.0
          %1521 = vmatmul.mubr.f32.gmra.mxu0 %v1448
          %v1522 = vpop.f32.mrf.mxu0
          %v1523 = vadd.f32 0.0, %v1522
          %v1524 = vpop.f32.mrf.mxu0
          %1525 = vdwg.mxu0
          %v1526 = vsel %vm1288, %v1523, -1e+30
          %vm1527 = vcmask 123904
          %v1528 = vsel %vm1527, %v1526, -inf
          %1529 = vmax.xlane.f32.xlu0 %v1528
          %v1530 = vpop.xlane.xlu0 %1529
          %v1531 = vsub.f32 %v1526, %v1530
          %v1532 = vmul.f32 %v1531, 1.442695
          %v1533 = vpow.pop %v1532
          %v1534 = vsel %vm1288, %v1533, 0.0
          %v1535 = vsel %vm1527, %v1534, 0.0
          %1536 = vadd.xlane.f32.xlu0 %v1535
          %v1537 = vpop.xlane.xlu0 %1536
          %v1538 = vmax.f32 %v1537, 1e-20
          %v1539 = vrcp.pop %v1538
          %v1540 = vmul.f32 %v1534, %v1539
          %v1542 = vsel %vm711, %v1540, 0
          %1544 = vmatprep.subr.mxu0 0.0
          %1545 = vmatpush1.msra.mxu0 0.0
          %1546 = vmatprep.subr.mxu0 0.0
          %1547 = vmatpush1.msra.mxu0 0.0
          %1548 = vmatprep.subr.mxu0 0.0
          %1549 = vmatpush1.msra.mxu0 0.0
          %1550 = vmatprep.subr.mxu0 0.0
          %1551 = vmatpush1.msra.mxu0 0.0
          %1552 = vmatprep.subr.mxu0 0.0
          %1553 = vmatpush1.msra.mxu0 0.0
          %1554 = vmatprep.subr.mxu0 0.0
          %1555 = vmatpush1.msra.mxu0 0.0
          %1556 = vmatprep.subr.mxu0 0.0
          %1557 = vmatpush1.msra.mxu0 0.0
          %1558 = vmatprep.subr.mxu0 0.0
          %1559 = vmatpush1.msra.mxu0 0.0
          %1560 = vmatprep.subr.mxu0 0.0
          %1561 = vmatpush1.msra.mxu0 0.0
          %1562 = vmatprep.subr.mxu0 0.0
          %1563 = vmatpush1.msra.mxu0 0.0
          %1564 = vmatprep.subr.mxu0 0.0
          %1565 = vmatpush1.msra.mxu0 0.0
          %1566 = vmatprep.subr.mxu0 0.0
          %1567 = vmatpush1.msra.mxu0 0.0
          %1568 = vmatprep.subr.mxu0 0.0
          %1569 = vmatpush1.msra.mxu0 0.0
          %1570 = vmatprep.subr.mxu0 0.0
          %1571 = vmatpush1.msra.mxu0 0.0
          %1572 = vmatprep.subr.mxu0 0.0
          %1573 = vmatpush1.msra.mxu0 %v1286
          %1574 = vmatprep.subr.mxu0 0.0
          %1575 = vmatpush1.msra.mxu0 %v1285
          %1576 = vmatprep.subr.mxu0 0.0
          %1577 = vmatpush2.msra.mxu0 0.0
          %1578 = vmatprep.subr.mxu0 0.0
          %1579 = vmatpush2.msra.mxu0 0.0
          %1580 = vmatprep.subr.mxu0 0.0
          %1581 = vmatpush2.msra.mxu0 0.0
          %1582 = vmatprep.subr.mxu0 0.0
          %1583 = vmatpush2.msra.mxu0 0.0
          %1584 = vmatprep.subr.mxu0 0.0
          %1585 = vmatpush2.msra.mxu0 0.0
          %1586 = vmatprep.subr.mxu0 0.0
          %1587 = vmatpush2.msra.mxu0 0.0
          %1588 = vmatprep.subr.mxu0 0.0
          %1589 = vmatpush2.msra.mxu0 0.0
          %1590 = vmatprep.subr.mxu0 0.0
          %1591 = vmatpush2.msra.mxu0 0.0
          %1592 = vmatprep.subr.mxu0 0.0
          %1593 = vmatpush2.msra.mxu0 0.0
          %1594 = vmatprep.subr.mxu0 0.0
          %1595 = vmatpush2.msra.mxu0 0.0
          %1596 = vmatprep.subr.mxu0 0.0
          %1597 = vmatpush2.msra.mxu0 0.0
          %1598 = vmatprep.subr.mxu0 0.0
          %1599 = vmatpush2.msra.mxu0 0.0
          %1600 = vmatprep.subr.mxu0 0.0
          %1601 = vmatpush2.msra.mxu0 0.0
          %1602 = vmatprep.subr.mxu0 0.0
          %1603 = vmatpush2.msra.mxu0 0.0
          %1604 = vmatprep.subr.mxu0 0.0
          %1605 = vmatpush2.msra.mxu0 0.0
          %1606 = vmatprep.subr.mxu0 0.0
          %1607 = vmatpush2.msra.mxu0 0.0
          %1608 = vmatprep.mubr.f32.mxu0 0.0
          %1609 = vmatmul.mubr.f32.gmra.mxu0 %v1542
          %v1610 = vpop.f32.mrf.mxu0
          %v1611 = vadd.f32 0.0, %v1610
          %v1612 = vpop.f32.mrf.mxu0
          %1613 = vdwg.mxu0
          %1616 = vrot.lane.b32.xlu0 %v1611, 64
          %v1617 = vpop.permute.xlu0 %1616
          %v1619 = vsel %vm790, %v1447, %v1617
          %1620 = vmatprep.subr.mxu0 %v1320
          %1621 = vmatpush1.msra.mxu0 %v1319
          %1622 = vmatprep.subr.mxu0 %v1318
          %1623 = vmatpush1.msra.mxu0 %v1317
          %1624 = vmatprep.subr.mxu0 %v1316
          %1625 = vmatpush1.msra.mxu0 %v1315
          %1626 = vmatprep.subr.mxu0 %v1314
          %1627 = vmatpush1.msra.mxu0 %v1313
          %1628 = vmatprep.subr.mxu0 %v1312
          %1629 = vmatpush1.msra.mxu0 %v1311
          %1630 = vmatprep.subr.mxu0 %v1310
          %1631 = vmatpush1.msra.mxu0 %v1309
          %1632 = vmatprep.subr.mxu0 %v1308
          %1633 = vmatpush1.msra.mxu0 %v1307
          %1634 = vmatprep.subr.mxu0 %v1306
          %1635 = vmatpush1.msra.mxu0 %v1305
          %1636 = vmatprep.subr.mxu0 %v1304
          %1637 = vmatpush1.msra.mxu0 %v1303
          %1638 = vmatprep.subr.mxu0 %v1302
          %1639 = vmatpush1.msra.mxu0 %v1301
          %1640 = vmatprep.subr.mxu0 %v1300
          %1641 = vmatpush1.msra.mxu0 %v1299
          %1642 = vmatprep.subr.mxu0 %v1298
          %1643 = vmatpush1.msra.mxu0 %v1297
          %1644 = vmatprep.subr.mxu0 %v1296
          %1645 = vmatpush1.msra.mxu0 %v1295
          %1646 = vmatprep.subr.mxu0 %v1294
          %1647 = vmatpush1.msra.mxu0 %v1293
          %1648 = vmatprep.subr.mxu0 %v1292
          %1649 = vmatpush1.msra.mxu0 %v1291
          %1650 = vmatprep.subr.mxu0 %v1290
          %1651 = vmatpush1.msra.mxu0 %v1289
          %1652 = vmatprep.subr.mxu0 0.0
          %1653 = vmatpush2.msra.mxu0 0.0
          %1654 = vmatprep.subr.mxu0 0.0
          %1655 = vmatpush2.msra.mxu0 0.0
          %1656 = vmatprep.subr.mxu0 0.0
          %1657 = vmatpush2.msra.mxu0 0.0
          %1658 = vmatprep.subr.mxu0 0.0
          %1659 = vmatpush2.msra.mxu0 0.0
          %1660 = vmatprep.subr.mxu0 0.0
          %1661 = vmatpush2.msra.mxu0 0.0
          %1662 = vmatprep.subr.mxu0 0.0
          %1663 = vmatpush2.msra.mxu0 0.0
          %1664 = vmatprep.subr.mxu0 0.0
          %1665 = vmatpush2.msra.mxu0 0.0
          %1666 = vmatprep.subr.mxu0 0.0
          %1667 = vmatpush2.msra.mxu0 0.0
          %1668 = vmatprep.subr.mxu0 %v1336
          %1669 = vmatpush2.msra.mxu0 %v1335
          %1670 = vmatprep.subr.mxu0 %v1334
          %1671 = vmatpush2.msra.mxu0 %v1333
          %1672 = vmatprep.subr.mxu0 %v1332
          %1673 = vmatpush2.msra.mxu0 %v1331
          %1674 = vmatprep.subr.mxu0 %v1330
          %1675 = vmatpush2.msra.mxu0 %v1329
          %1676 = vmatprep.subr.mxu0 %v1328
          %1677 = vmatpush2.msra.mxu0 %v1327
          %1678 = vmatprep.subr.mxu0 %v1326
          %1679 = vmatpush2.msra.mxu0 %v1325
          %1680 = vmatprep.subr.mxu0 %v1324
          %1681 = vmatpush2.msra.mxu0 %v1323
          %1682 = vmatprep.subr.mxu0 %v1322
          %1683 = vmatpush2.msra.mxu0 %v1321
          %1684 = vmatprep.mubr.f32.mxu0 %v1448
          %1685 = vmatmul.mubr.f32.gmra.mxu0 %v1619
          %v1686 = vpop.f32.mrf.mxu0
          %v1687 = vadd.f32 %v1342, %v1686
          %v1688 = vpop.f32.mrf.mxu0
          %v1689 = vadd.f32 %v1346, %v1688
          %1690 = vdwg.mxu0
          %v1691 = vxor.u32 %v1687, 2147483648
          %v1692 = vmul.f32 %v1691, 1.442695
          %v1693 = vpow.pop %v1692
          %v1694 = vadd.f32 %v1693, 1.0
          %v1695 = vrcp.pop %v1694
          %v1696 = vmul.f32 1.0, %v1695
          %v1697 = vtanh.pop %v1689
          %v1698 = vxor.u32 %v1689, 2147483648
          %v1699 = vmul.f32 %v1698, 1.442695
          %v1700 = vpow.pop %v1699
          %v1701 = vadd.f32 %v1700, 1.0
          %v1702 = vrcp.pop %v1701
          %v1703 = vmul.f32 1.0, %v1702
          %v1704 = vmul.f32 %v1696, %v1442
          %v1705 = vmul.f32 %v1696, %v1697
          %1707 = vrot.lane.b32.xlu0 %v1705, 64
          %v1708 = vpop.permute.xlu0 %1707
          %v1710 = vadd.f32 %v1704, %v1708
          %v1711 = vtanh.pop %v1710
          %v1712 = vmul.f32 %v1703, %v1711
          %1714 = vrot.lane.b32.xlu0 %v1712, 64
          %v1715 = vpop.permute.xlu0 %1714
          %v1716 = vsel %vm790, %v1715, 0
          %1718 = vmatprep.subr.mxu0 0.0
          %1719 = vmatpush1.xpose.msra.mxu0 0.0
          %1720 = vmatprep.subr.mxu0 0.0
          %1721 = vmatpush1.xpose.msra.mxu0 0.0
          %1722 = vmatprep.subr.mxu0 0.0
          %1723 = vmatpush1.xpose.msra.mxu0 0.0
          %1724 = vmatprep.subr.mxu0 0.0
          %1725 = vmatpush1.xpose.msra.mxu0 0.0
          %1726 = vmatprep.subr.mxu0 0.0
          %1727 = vmatpush1.xpose.msra.mxu0 0.0
          %1728 = vmatprep.subr.mxu0 0.0
          %1729 = vmatpush1.xpose.msra.mxu0 0.0
          %1730 = vmatprep.subr.mxu0 0.0
          %1731 = vmatpush1.xpose.msra.mxu0 0.0
          %1732 = vmatprep.subr.mxu0 0.0
          %1733 = vmatpush1.xpose.msra.mxu0 0.0
          %1734 = vmatprep.subr.mxu0 0.0
          %1735 = vmatpush1.xpose.msra.mxu0 0.0
          %1736 = vmatprep.subr.mxu0 0.0
          %1737 = vmatpush1.xpose.msra.mxu0 0.0
          %1738 = vmatprep.subr.mxu0 0.0
          %1739 = vmatpush1.xpose.msra.mxu0 0.0
          %1740 = vmatprep.subr.mxu0 0.0
          %1741 = vmatpush1.xpose.msra.mxu0 0.0
          %1742 = vmatprep.subr.mxu0 0.0
          %1743 = vmatpush1.xpose.msra.mxu0 0.0
          %1744 = vmatprep.subr.mxu0 0.0
          %1745 = vmatpush1.xpose.msra.mxu0 0.0
          %1746 = vmatprep.subr.mxu0 0.0
          %1747 = vmatpush1.xpose.msra.mxu0 %v1454
          %1748 = vmatprep.subr.mxu0 0.0
          %1749 = vmatpush1.xpose.msra.mxu0 %v1451
          %1750 = vmatprep.subr.mxu0 0.0
          %1751 = vmatpush2.xpose.msra.mxu0 0.0
          %1752 = vmatprep.subr.mxu0 0.0
          %1753 = vmatpush2.xpose.msra.mxu0 0.0
          %1754 = vmatprep.subr.mxu0 0.0
          %1755 = vmatpush2.xpose.msra.mxu0 0.0
          %1756 = vmatprep.subr.mxu0 0.0
          %1757 = vmatpush2.xpose.msra.mxu0 0.0
          %1758 = vmatprep.subr.mxu0 0.0
          %1759 = vmatpush2.xpose.msra.mxu0 0.0
          %1760 = vmatprep.subr.mxu0 0.0
          %1761 = vmatpush2.xpose.msra.mxu0 0.0
          %1762 = vmatprep.subr.mxu0 0.0
          %1763 = vmatpush2.xpose.msra.mxu0 0.0
          %1764 = vmatprep.subr.mxu0 0.0
          %1765 = vmatpush2.xpose.msra.mxu0 0.0
          %1766 = vmatprep.subr.mxu0 0.0
          %1767 = vmatpush2.xpose.msra.mxu0 0.0
          %1768 = vmatprep.subr.mxu0 0.0
          %1769 = vmatpush2.xpose.msra.mxu0 0.0
          %1770 = vmatprep.subr.mxu0 0.0
          %1771 = vmatpush2.xpose.msra.mxu0 0.0
          %1772 = vmatprep.subr.mxu0 0.0
          %1773 = vmatpush2.xpose.msra.mxu0 0.0
          %1774 = vmatprep.subr.mxu0 0.0
          %1775 = vmatpush2.xpose.msra.mxu0 0.0
          %1776 = vmatprep.subr.mxu0 0.0
          %1777 = vmatpush2.xpose.msra.mxu0 0.0
          %1778 = vmatprep.subr.mxu0 0.0
          %1779 = vmatpush2.xpose.msra.mxu0 0.0
          %1780 = vmatprep.subr.mxu0 0.0
          %1781 = vmatpush2.xpose.msra.mxu0 0.0
          %1782 = vmatprep.mubr.f32.mxu0 0.0
          %1783 = vmatmul.mubr.f32.gmra.mxu0 %v1716
          %v1784 = vpop.f32.mrf.mxu0
          %v1785 = vadd.f32 0.0, %v1784
          %v1786 = vpop.f32.mrf.mxu0
          %1787 = vdwg.mxu0
          %v1788 = vsel %vm1288, %v1785, -1e+30
          %v1789 = vsel %vm1527, %v1788, -inf
          %1790 = vmax.xlane.f32.xlu0 %v1789
          %v1791 = vpop.xlane.xlu0 %1790
          %v1792 = vsub.f32 %v1788, %v1791
          %v1793 = vmul.f32 %v1792, 1.442695
          %v1794 = vpow.pop %v1793
          %v1795 = vsel %vm1288, %v1794, 0.0
          %v1796 = vsel %vm1527, %v1795, 0.0
          %1797 = vadd.xlane.f32.xlu0 %v1796
          %v1798 = vpop.xlane.xlu0 %1797
          %v1799 = vmax.f32 %v1798, 1e-20
          %v1800 = vrcp.pop %v1799
          %v1801 = vmul.f32 %v1795, %v1800
          %v1803 = vsel %vm711, %v1801, 0
          %1805 = vmatprep.subr.mxu0 0.0
          %1806 = vmatpush1.msra.mxu0 0.0
          %1807 = vmatprep.subr.mxu0 0.0
          %1808 = vmatpush1.msra.mxu0 0.0
          %1809 = vmatprep.subr.mxu0 0.0
          %1810 = vmatpush1.msra.mxu0 0.0
          %1811 = vmatprep.subr.mxu0 0.0
          %1812 = vmatpush1.msra.mxu0 0.0
          %1813 = vmatprep.subr.mxu0 0.0
          %1814 = vmatpush1.msra.mxu0 0.0
          %1815 = vmatprep.subr.mxu0 0.0
          %1816 = vmatpush1.msra.mxu0 0.0
          %1817 = vmatprep.subr.mxu0 0.0
          %1818 = vmatpush1.msra.mxu0 0.0
          %1819 = vmatprep.subr.mxu0 0.0
          %1820 = vmatpush1.msra.mxu0 0.0
          %1821 = vmatprep.subr.mxu0 0.0
          %1822 = vmatpush1.msra.mxu0 0.0
          %1823 = vmatprep.subr.mxu0 0.0
          %1824 = vmatpush1.msra.mxu0 0.0
          %1825 = vmatprep.subr.mxu0 0.0
          %1826 = vmatpush1.msra.mxu0 0.0
          %1827 = vmatprep.subr.mxu0 0.0
          %1828 = vmatpush1.msra.mxu0 0.0
          %1829 = vmatprep.subr.mxu0 0.0
          %1830 = vmatpush1.msra.mxu0 0.0
          %1831 = vmatprep.subr.mxu0 0.0
          %1832 = vmatpush1.msra.mxu0 0.0
          %1833 = vmatprep.subr.mxu0 0.0
          %1834 = vmatpush1.msra.mxu0 %v1286
          %1835 = vmatprep.subr.mxu0 0.0
          %1836 = vmatpush1.msra.mxu0 %v1285
          %1837 = vmatprep.subr.mxu0 0.0
          %1838 = vmatpush2.msra.mxu0 0.0
          %1839 = vmatprep.subr.mxu0 0.0
          %1840 = vmatpush2.msra.mxu0 0.0
          %1841 = vmatprep.subr.mxu0 0.0
          %1842 = vmatpush2.msra.mxu0 0.0
          %1843 = vmatprep.subr.mxu0 0.0
          %1844 = vmatpush2.msra.mxu0 0.0
          %1845 = vmatprep.subr.mxu0 0.0
          %1846 = vmatpush2.msra.mxu0 0.0
          %1847 = vmatprep.subr.mxu0 0.0
          %1848 = vmatpush2.msra.mxu0 0.0
          %1849 = vmatprep.subr.mxu0 0.0
          %1850 = vmatpush2.msra.mxu0 0.0
          %1851 = vmatprep.subr.mxu0 0.0
          %1852 = vmatpush2.msra.mxu0 0.0
          %1853 = vmatprep.subr.mxu0 0.0
          %1854 = vmatpush2.msra.mxu0 0.0
          %1855 = vmatprep.subr.mxu0 0.0
          %1856 = vmatpush2.msra.mxu0 0.0
          %1857 = vmatprep.subr.mxu0 0.0
          %1858 = vmatpush2.msra.mxu0 0.0
          %1859 = vmatprep.subr.mxu0 0.0
          %1860 = vmatpush2.msra.mxu0 0.0
          %1861 = vmatprep.subr.mxu0 0.0
          %1862 = vmatpush2.msra.mxu0 0.0
          %1863 = vmatprep.subr.mxu0 0.0
          %1864 = vmatpush2.msra.mxu0 0.0
          %1865 = vmatprep.subr.mxu0 0.0
          %1866 = vmatpush2.msra.mxu0 0.0
          %1867 = vmatprep.subr.mxu0 0.0
          %1868 = vmatpush2.msra.mxu0 0.0
          %1869 = vmatprep.mubr.f32.mxu0 0.0
          %1870 = vmatmul.mubr.f32.gmra.mxu0 %v1803
          %v1871 = vpop.f32.mrf.mxu0
          %v1872 = vadd.f32 0.0, %v1871
          %v1873 = vpop.f32.mrf.mxu0
          %1874 = vdwg.mxu0
          %1877 = vrot.lane.b32.xlu0 %v1872, 64
          %v1878 = vpop.permute.xlu0 %1877
          %v1880 = vsel %vm790, %v1715, %v1878
          %1881 = vmatprep.subr.mxu0 %v1320
          %1882 = vmatpush1.msra.mxu0 %v1319
          %1883 = vmatprep.subr.mxu0 %v1318
          %1884 = vmatpush1.msra.mxu0 %v1317
          %1885 = vmatprep.subr.mxu0 %v1316
          %1886 = vmatpush1.msra.mxu0 %v1315
          %1887 = vmatprep.subr.mxu0 %v1314
          %1888 = vmatpush1.msra.mxu0 %v1313
          %1889 = vmatprep.subr.mxu0 %v1312
          %1890 = vmatpush1.msra.mxu0 %v1311
          %1891 = vmatprep.subr.mxu0 %v1310
          %1892 = vmatpush1.msra.mxu0 %v1309
          %1893 = vmatprep.subr.mxu0 %v1308
          %1894 = vmatpush1.msra.mxu0 %v1307
          %1895 = vmatprep.subr.mxu0 %v1306
          %1896 = vmatpush1.msra.mxu0 %v1305
          %1897 = vmatprep.subr.mxu0 %v1304
          %1898 = vmatpush1.msra.mxu0 %v1303
          %1899 = vmatprep.subr.mxu0 %v1302
          %1900 = vmatpush1.msra.mxu0 %v1301
          %1901 = vmatprep.subr.mxu0 %v1300
          %1902 = vmatpush1.msra.mxu0 %v1299
          %1903 = vmatprep.subr.mxu0 %v1298
          %1904 = vmatpush1.msra.mxu0 %v1297
          %1905 = vmatprep.subr.mxu0 %v1296
          %1906 = vmatpush1.msra.mxu0 %v1295
          %1907 = vmatprep.subr.mxu0 %v1294
          %1908 = vmatpush1.msra.mxu0 %v1293
          %1909 = vmatprep.subr.mxu0 %v1292
          %1910 = vmatpush1.msra.mxu0 %v1291
          %1911 = vmatprep.subr.mxu0 %v1290
          %1912 = vmatpush1.msra.mxu0 %v1289
          %1913 = vmatprep.subr.mxu0 0.0
          %1914 = vmatpush2.msra.mxu0 0.0
          %1915 = vmatprep.subr.mxu0 0.0
          %1916 = vmatpush2.msra.mxu0 0.0
          %1917 = vmatprep.subr.mxu0 0.0
          %1918 = vmatpush2.msra.mxu0 0.0
          %1919 = vmatprep.subr.mxu0 0.0
          %1920 = vmatpush2.msra.mxu0 0.0
          %1921 = vmatprep.subr.mxu0 0.0
          %1922 = vmatpush2.msra.mxu0 0.0
          %1923 = vmatprep.subr.mxu0 0.0
          %1924 = vmatpush2.msra.mxu0 0.0
          %1925 = vmatprep.subr.mxu0 0.0
          %1926 = vmatpush2.msra.mxu0 0.0
          %1927 = vmatprep.subr.mxu0 0.0
          %1928 = vmatpush2.msra.mxu0 0.0
          %1929 = vmatprep.subr.mxu0 %v1336
          %1930 = vmatpush2.msra.mxu0 %v1335
          %1931 = vmatprep.subr.mxu0 %v1334
          %1932 = vmatpush2.msra.mxu0 %v1333
          %1933 = vmatprep.subr.mxu0 %v1332
          %1934 = vmatpush2.msra.mxu0 %v1331
          %1935 = vmatprep.subr.mxu0 %v1330
          %1936 = vmatpush2.msra.mxu0 %v1329
          %1937 = vmatprep.subr.mxu0 %v1328
          %1938 = vmatpush2.msra.mxu0 %v1327
          %1939 = vmatprep.subr.mxu0 %v1326
          %1940 = vmatpush2.msra.mxu0 %v1325
          %1941 = vmatprep.subr.mxu0 %v1324
          %1942 = vmatpush2.msra.mxu0 %v1323
          %1943 = vmatprep.subr.mxu0 %v1322
          %1944 = vmatpush2.msra.mxu0 %v1321
          %1945 = vmatprep.mubr.f32.mxu0 %v1716
          %1946 = vmatmul.mubr.f32.gmra.mxu0 %v1880
          %v1947 = vpop.f32.mrf.mxu0
          %v1948 = vadd.f32 %v1342, %v1947
          %v1949 = vpop.f32.mrf.mxu0
          %v1950 = vadd.f32 %v1346, %v1949
          %1951 = vdwg.mxu0
          %v1952 = vxor.u32 %v1948, 2147483648
          %v1953 = vmul.f32 %v1952, 1.442695
          %v1954 = vpow.pop %v1953
          %v1955 = vadd.f32 %v1954, 1.0
          %v1956 = vrcp.pop %v1955
          %v1957 = vmul.f32 1.0, %v1956
          %v1958 = vtanh.pop %v1950
          %v1959 = vxor.u32 %v1950, 2147483648
          %v1960 = vmul.f32 %v1959, 1.442695
          %v1961 = vpow.pop %v1960
          %v1962 = vadd.f32 %v1961, 1.0
          %v1963 = vrcp.pop %v1962
          %v1964 = vmul.f32 1.0, %v1963
          %v1965 = vmul.f32 %v1957, %v1710
          %v1966 = vmul.f32 %v1957, %v1958
          %1968 = vrot.lane.b32.xlu0 %v1966, 64
          %v1969 = vpop.permute.xlu0 %1968
          %v1971 = vadd.f32 %v1965, %v1969
          %v1972 = vtanh.pop %v1971
          %v1973 = vmul.f32 %v1964, %v1972
          %1975 = vrot.lane.b32.xlu0 %v1973, 64
          %v1976 = vpop.permute.xlu0 %1975
          %v1977 = vsel %vm790, %v1976, 0
          %1979 = vmatprep.subr.mxu0 0.0
          %1980 = vmatpush1.xpose.msra.mxu0 0.0
          %1981 = vmatprep.subr.mxu0 0.0
          %1982 = vmatpush1.xpose.msra.mxu0 0.0
          %1983 = vmatprep.subr.mxu0 0.0
          %1984 = vmatpush1.xpose.msra.mxu0 0.0
          %1985 = vmatprep.subr.mxu0 0.0
          %1986 = vmatpush1.xpose.msra.mxu0 0.0
          %1987 = vmatprep.subr.mxu0 0.0
          %1988 = vmatpush1.xpose.msra.mxu0 0.0
          %1989 = vmatprep.subr.mxu0 0.0
          %1990 = vmatpush1.xpose.msra.mxu0 0.0
          %1991 = vmatprep.subr.mxu0 0.0
          %1992 = vmatpush1.xpose.msra.mxu0 0.0
          %1993 = vmatprep.subr.mxu0 0.0
          %1994 = vmatpush1.xpose.msra.mxu0 0.0
          %1995 = vmatprep.subr.mxu0 0.0
          %1996 = vmatpush1.xpose.msra.mxu0 0.0
          %1997 = vmatprep.subr.mxu0 0.0
          %1998 = vmatpush1.xpose.msra.mxu0 0.0
          %1999 = vmatprep.subr.mxu0 0.0
          %2000 = vmatpush1.xpose.msra.mxu0 0.0
          %2001 = vmatprep.subr.mxu0 0.0
          %2002 = vmatpush1.xpose.msra.mxu0 0.0
          %2003 = vmatprep.subr.mxu0 0.0
          %2004 = vmatpush1.xpose.msra.mxu0 0.0
          %2005 = vmatprep.subr.mxu0 0.0
          %2006 = vmatpush1.xpose.msra.mxu0 0.0
          %2007 = vmatprep.subr.mxu0 0.0
          %2008 = vmatpush1.xpose.msra.mxu0 %v1454
          %2009 = vmatprep.subr.mxu0 0.0
          %2010 = vmatpush1.xpose.msra.mxu0 %v1451
          %2011 = vmatprep.subr.mxu0 0.0
          %2012 = vmatpush2.xpose.msra.mxu0 0.0
          %2013 = vmatprep.subr.mxu0 0.0
          %2014 = vmatpush2.xpose.msra.mxu0 0.0
          %2015 = vmatprep.subr.mxu0 0.0
          %2016 = vmatpush2.xpose.msra.mxu0 0.0
          %2017 = vmatprep.subr.mxu0 0.0
          %2018 = vmatpush2.xpose.msra.mxu0 0.0
          %2019 = vmatprep.subr.mxu0 0.0
          %2020 = vmatpush2.xpose.msra.mxu0 0.0
          %2021 = vmatprep.subr.mxu0 0.0
          %2022 = vmatpush2.xpose.msra.mxu0 0.0
          %2023 = vmatprep.subr.mxu0 0.0
          %2024 = vmatpush2.xpose.msra.mxu0 0.0
          %2025 = vmatprep.subr.mxu0 0.0
          %2026 = vmatpush2.xpose.msra.mxu0 0.0
          %2027 = vmatprep.subr.mxu0 0.0
          %2028 = vmatpush2.xpose.msra.mxu0 0.0
          %2029 = vmatprep.subr.mxu0 0.0
          %2030 = vmatpush2.xpose.msra.mxu0 0.0
          %2031 = vmatprep.subr.mxu0 0.0
          %2032 = vmatpush2.xpose.msra.mxu0 0.0
          %2033 = vmatprep.subr.mxu0 0.0
          %2034 = vmatpush2.xpose.msra.mxu0 0.0
          %2035 = vmatprep.subr.mxu0 0.0
          %2036 = vmatpush2.xpose.msra.mxu0 0.0
          %2037 = vmatprep.subr.mxu0 0.0
          %2038 = vmatpush2.xpose.msra.mxu0 0.0
          %2039 = vmatprep.subr.mxu0 0.0
          %2040 = vmatpush2.xpose.msra.mxu0 0.0
          %2041 = vmatprep.subr.mxu0 0.0
          %2042 = vmatpush2.xpose.msra.mxu0 0.0
          %2043 = vmatprep.mubr.f32.mxu0 0.0
          %2044 = vmatmul.mubr.f32.gmra.mxu0 %v1977
          %v2045 = vpop.f32.mrf.mxu0
          %v2046 = vadd.f32 0.0, %v2045
          %v2047 = vpop.f32.mrf.mxu0
          %2048 = vdwg.mxu0
          %v2049 = vsel %vm1288, %v2046, -1e+30
          %v2050 = vsel %vm1527, %v2049, -inf
          %2051 = vmax.xlane.f32.xlu0 %v2050
          %v2052 = vpop.xlane.xlu0 %2051
          %v2053 = vsub.f32 %v2049, %v2052
          %v2054 = vmul.f32 %v2053, 1.442695
          %v2055 = vpow.pop %v2054
          %v2056 = vsel %vm1288, %v2055, 0.0
          %v2057 = vsel %vm1527, %v2056, 0.0
          %2058 = vadd.xlane.f32.xlu0 %v2057
          %v2059 = vpop.xlane.xlu0 %2058
          %v2060 = vmax.f32 %v2059, 1e-20
          %v2061 = vrcp.pop %v2060
          %v2062 = vmul.f32 %v2056, %v2061
          %v2064 = vsel %vm711, %v2062, 0
          %2066 = vmatprep.subr.mxu0 0.0
          %2067 = vmatpush1.msra.mxu0 0.0
          %2068 = vmatprep.subr.mxu0 0.0
          %2069 = vmatpush1.msra.mxu0 0.0
          %2070 = vmatprep.subr.mxu0 0.0
          %2071 = vmatpush1.msra.mxu0 0.0
          %2072 = vmatprep.subr.mxu0 0.0
          %2073 = vmatpush1.msra.mxu0 0.0
          %2074 = vmatprep.subr.mxu0 0.0
          %2075 = vmatpush1.msra.mxu0 0.0
          %2076 = vmatprep.subr.mxu0 0.0
          %2077 = vmatpush1.msra.mxu0 0.0
          %2078 = vmatprep.subr.mxu0 0.0
          %2079 = vmatpush1.msra.mxu0 0.0
          %2080 = vmatprep.subr.mxu0 0.0
          %2081 = vmatpush1.msra.mxu0 0.0
          %2082 = vmatprep.subr.mxu0 0.0
          %2083 = vmatpush1.msra.mxu0 0.0
          %2084 = vmatprep.subr.mxu0 0.0
          %2085 = vmatpush1.msra.mxu0 0.0
          %2086 = vmatprep.subr.mxu0 0.0
          %2087 = vmatpush1.msra.mxu0 0.0
          %2088 = vmatprep.subr.mxu0 0.0
          %2089 = vmatpush1.msra.mxu0 0.0
          %2090 = vmatprep.subr.mxu0 0.0
          %2091 = vmatpush1.msra.mxu0 0.0
          %2092 = vmatprep.subr.mxu0 0.0
          %2093 = vmatpush1.msra.mxu0 0.0
          %2094 = vmatprep.subr.mxu0 0.0
          %2095 = vmatpush1.msra.mxu0 %v1286
          %2096 = vmatprep.subr.mxu0 0.0
          %2097 = vmatpush1.msra.mxu0 %v1285
          %2098 = vmatprep.subr.mxu0 0.0
          %2099 = vmatpush2.msra.mxu0 0.0
          %2100 = vmatprep.subr.mxu0 0.0
          %2101 = vmatpush2.msra.mxu0 0.0
          %2102 = vmatprep.subr.mxu0 0.0
          %2103 = vmatpush2.msra.mxu0 0.0
          %2104 = vmatprep.subr.mxu0 0.0
          %2105 = vmatpush2.msra.mxu0 0.0
          %2106 = vmatprep.subr.mxu0 0.0
          %2107 = vmatpush2.msra.mxu0 0.0
          %2108 = vmatprep.subr.mxu0 0.0
          %2109 = vmatpush2.msra.mxu0 0.0
          %2110 = vmatprep.subr.mxu0 0.0
          %2111 = vmatpush2.msra.mxu0 0.0
          %2112 = vmatprep.subr.mxu0 0.0
          %2113 = vmatpush2.msra.mxu0 0.0
          %2114 = vmatprep.subr.mxu0 0.0
          %2115 = vmatpush2.msra.mxu0 0.0
          %2116 = vmatprep.subr.mxu0 0.0
          %2117 = vmatpush2.msra.mxu0 0.0
          %2118 = vmatprep.subr.mxu0 0.0
          %2119 = vmatpush2.msra.mxu0 0.0
          %2120 = vmatprep.subr.mxu0 0.0
          %2121 = vmatpush2.msra.mxu0 0.0
          %2122 = vmatprep.subr.mxu0 0.0
          %2123 = vmatpush2.msra.mxu0 0.0
          %2124 = vmatprep.subr.mxu0 0.0
          %2125 = vmatpush2.msra.mxu0 0.0
          %2126 = vmatprep.subr.mxu0 0.0
          %2127 = vmatpush2.msra.mxu0 0.0
          %2128 = vmatprep.subr.mxu0 0.0
          %2129 = vmatpush2.msra.mxu0 0.0
          %2130 = vmatprep.mubr.f32.mxu0 0.0
          %2131 = vmatmul.mubr.f32.gmra.mxu0 %v2064
          %v2132 = vpop.f32.mrf.mxu0
          %v2133 = vadd.f32 0.0, %v2132
          %v2134 = vpop.f32.mrf.mxu0
          %2135 = vdwg.mxu0
          %2138 = vrot.lane.b32.xlu0 %v2133, 64
          %v2139 = vpop.permute.xlu0 %2138
          %v2141 = vsel %vm790, %v1976, %v2139
          %v2142 = vld [vmem:[%s13] sm:$0xff]
          %v2143 = vld [vmem:[%s13 + $0x8] sm:$0xff]
          %v2144 = vld [vmem:[%s13 + $0x10] sm:$0xff]
          %v2145 = vld [vmem:[%s13 + $0x18] sm:$0xff]
          %v2146 = vld [vmem:[%s13 + $0x20] sm:$0xff]
          %v2147 = vld [vmem:[%s13 + $0x28] sm:$0xff]
          %v2148 = vld [vmem:[%s13 + $0x30] sm:$0xff]
          %v2149 = vld [vmem:[%s13 + $0x38] sm:$0xff]
          %v2150 = vld [vmem:[%s13 + $0x40] sm:$0xff]
          %v2151 = vld [vmem:[%s13 + $0x48] sm:$0xff]
          %v2152 = vld [vmem:[%s13 + $0x50] sm:$0xff]
          %v2153 = vld [vmem:[%s13 + $0x58] sm:$0xff]
          %v2154 = vld [vmem:[%s13 + $0x60] sm:$0xff]
          %v2155 = vld [vmem:[%s13 + $0x68] sm:$0xff]
          %v2156 = vld [vmem:[%s13 + $0x70] sm:$0xff]
          %v2157 = vld [vmem:[%s13 + $0x78] sm:$0xff]
          %v2158 = vld [vmem:[%s14] sm:$0x1]
          %v2160 = vlaneseq
          %v2161 = vshrl.u32 %v2160, 7
          %v2162 = vsub.s32 0, %v2161
          %v2163 = vrot.slane %v2158, %v2162
          %2165 = vmatprep.subr.mxu0 0.0
          %2166 = vmatpush1.msra.mxu0 %v2157
          %2167 = vmatprep.subr.mxu0 0.0
          %2168 = vmatpush1.msra.mxu0 %v2156
          %2169 = vmatprep.subr.mxu0 0.0
          %2170 = vmatpush1.msra.mxu0 %v2155
          %2171 = vmatprep.subr.mxu0 0.0
          %2172 = vmatpush1.msra.mxu0 %v2154
          %2173 = vmatprep.subr.mxu0 0.0
          %2174 = vmatpush1.msra.mxu0 %v2153
          %2175 = vmatprep.subr.mxu0 0.0
          %2176 = vmatpush1.msra.mxu0 %v2152
          %2177 = vmatprep.subr.mxu0 0.0
          %2178 = vmatpush1.msra.mxu0 %v2151
          %2179 = vmatprep.subr.mxu0 0.0
          %2180 = vmatpush1.msra.mxu0 %v2150
          %2181 = vmatprep.subr.mxu0 0.0
          %2182 = vmatpush1.msra.mxu0 %v2149
          %2183 = vmatprep.subr.mxu0 0.0
          %2184 = vmatpush1.msra.mxu0 %v2148
          %2185 = vmatprep.subr.mxu0 0.0
          %2186 = vmatpush1.msra.mxu0 %v2147
          %2187 = vmatprep.subr.mxu0 0.0
          %2188 = vmatpush1.msra.mxu0 %v2146
          %2189 = vmatprep.subr.mxu0 0.0
          %2190 = vmatpush1.msra.mxu0 %v2145
          %2191 = vmatprep.subr.mxu0 0.0
          %2192 = vmatpush1.msra.mxu0 %v2144
          %2193 = vmatprep.subr.mxu0 0.0
          %2194 = vmatpush1.msra.mxu0 %v2143
          %2195 = vmatprep.subr.mxu0 0.0
          %2196 = vmatpush1.msra.mxu0 %v2142
          %2197 = vmatprep.subr.mxu0 0.0
          %2198 = vmatpush2.msra.mxu0 0.0
          %2199 = vmatprep.subr.mxu0 0.0
          %2200 = vmatpush2.msra.mxu0 0.0
          %2201 = vmatprep.subr.mxu0 0.0
          %2202 = vmatpush2.msra.mxu0 0.0
          %2203 = vmatprep.subr.mxu0 0.0
          %2204 = vmatpush2.msra.mxu0 0.0
          %2205 = vmatprep.subr.mxu0 0.0
          %2206 = vmatpush2.msra.mxu0 0.0
          %2207 = vmatprep.subr.mxu0 0.0
          %2208 = vmatpush2.msra.mxu0 0.0
          %2209 = vmatprep.subr.mxu0 0.0
          %2210 = vmatpush2.msra.mxu0 0.0
          %2211 = vmatprep.subr.mxu0 0.0
          %2212 = vmatpush2.msra.mxu0 0.0
          %2213 = vmatprep.subr.mxu0 0.0
          %2214 = vmatpush2.msra.mxu0 0.0
          %2215 = vmatprep.subr.mxu0 0.0
          %2216 = vmatpush2.msra.mxu0 0.0
          %2217 = vmatprep.subr.mxu0 0.0
          %2218 = vmatpush2.msra.mxu0 0.0
          %2219 = vmatprep.subr.mxu0 0.0
          %2220 = vmatpush2.msra.mxu0 0.0
          %2221 = vmatprep.subr.mxu0 0.0
          %2222 = vmatpush2.msra.mxu0 0.0
          %2223 = vmatprep.subr.mxu0 0.0
          %2224 = vmatpush2.msra.mxu0 0.0
          %2225 = vmatprep.subr.mxu0 0.0
          %2226 = vmatpush2.msra.mxu0 0.0
          %2227 = vmatprep.subr.mxu0 0.0
          %2228 = vmatpush2.msra.mxu0 0.0
          %2229 = vmatprep.mubr.f32.mxu0 0.0
          %2230 = vmatmul.mubr.f32.gmra.mxu0 %v2141
          %v2231 = vpop.f32.mrf.mxu0
          %v2232 = vadd.f32 %v2163, %v2231
          %v2233 = vpop.f32.mrf.mxu0
          %2234 = vdwg.mxu0
          %v2235 = vld [vmem:[#allocation6] sm:$0x1]
          %vm2236 = vcmp.ge.f32.partialorder %v2232, 0.0
          %v2238 = vlaneseq
          %v2239 = vshrl.u32 %v2238, 7
          %v2240 = vsub.s32 0, %v2239
          %v2241 = vrot.slane %v2235, %v2240
          %2242 = vset.pattern.permute.xlu0 0
          %2243 = vperm.xlu0 %2242, %v2241
          %v2244 = vpop.permute.xlu0 %2243
          %v2246 = vmul.f32 %v2244, %v2232
          %v2247 = vsel %vm2236, %v2232, %v2246
          %2248 = vst [vmem:[#allocation7] sm:$0x3] %v2247
        $region100: #{mpnn_forward.1} parent=83 // pred_fallthru
          _
        // Predicated region
        $region101: #{mpnn_forward.1} parent=83 // pred_check
          %p2249 = pneg %p406
        $region102: #{mpnn_forward.1} parent=83 // pred_check_branch
          %2251 = sbr.rel (%p2249) target = $region104
        $region103: #{mpnn_forward.1} parent=83 // pred_region
          %s2253 = ssub.s32 32, 32
          %2254 = vsyncadd [#allocation8], %s2253
          %s2256 = sshll.u32 [#allocation7], 4
          %s2257 = int_to_ptr.vmem [resolvable:$true] %s2256
          %2259 = dma.vmem_to_hbm [thread:$0]  %s2257, 32, %s16, [#allocation8]
        $region104: #{mpnn_forward.1} parent=83 // pred_fallthru
          _
        // Predicated region
        $region105: #{mpnn_forward.1} parent=83 // pred_check
          %p2260 = pneg %p406
        $region106: #{mpnn_forward.1} parent=83 // pred_check_branch
          %2262 = sbr.rel (%p2260) target = $region108
        $region107: #{mpnn_forward.1} parent=83 // pred_region
          %2263 = dma.done [#allocation8], 32
        $region108: #{mpnn_forward.1} parent=83 // pred_fallthru
          _
      $region84: #{mpnn_forward.1} parent=5 // pred_fallthru
        _
      %p2264 = scmp.le.s32.totalorder 2, %s25
      // Predicated region
      $region109: #{mpnn_forward.1} parent=5 // pred_check
        %p2265 = pneg %p2264
      $region110: #{mpnn_forward.1} parent=5 // pred_check_branch
        %2267 = sbr.rel (%p2265) target = $region112
      $region111: #{mpnn_forward.1} parent=5 // pred_region
        %s2268 = ssub.s32 %s25, 2
      $region112: #{mpnn_forward.1} parent=5 // pred_fallthru
        _
    $region6: #{mpnn_forward.1} parent=1 // loop_footer
      %s29 = sadd.s32 1, %s25
    $region7: #{mpnn_forward.1} parent=1 // loop_footer_branch
      %24 = sbr.rel target = $region3
    $region8: #{mpnn_forward.1} parent=1 // loop_exit
      _
    %2269 = vsyncpa [#allocation8], 1
    %s2270 = scalar_lea.sflag [#allocation8], 1
    %2271 = vsyncpa %s2270, 1

</llo_original>
